<compile_context>
chip_gen: v7x
topology: tpu7x:2x2x1
jax: 0.10.0
libtpu: 0.0.40
codegen_flags: <defaults>
</compile_context>

<pallas_src>
import jax
import jax.numpy as jnp
import numpy as np
from jax.experimental import pallas as pl
from jax.experimental.pallas import tpu as pltpu

# ----------------------------------------------------------------------------
# Small, lane-friendly configuration (real module uses embed_dim=1024, n_head=4)
# ----------------------------------------------------------------------------
B = 2                 # batch
C = 4                 # image channels
H = 16                # spatial height
W = 16                # spatial width
EMBED = 128           # embed_dim        (1024 in the real module)
MODEL_EMBED = 128     # model_embed_dim  (1024 in the real module)
N_HEAD = 4            # heads (softmax over a length-1 key axis is trivially 1)
HIDDEN = 4 * EMBED    # MLP hidden width
HID_BLK = 256         # fc1 N-block == fc2 K-block; 256-multiple fills the
                      # 2x256x256 MXU on v6e/v7x (use 512 at real HIDDEN=4096)
LN_EPS = 1e-5         # torch.nn.LayerNorm default eps

_INV_SQRT2 = 0.7071067811865476

assert HIDDEN % HID_BLK == 0


def _round_up(v, m):
    return ((v + m - 1) // m) * m


def _choose_tiling(b):
    """Adaptive batch tiling.

    - small batches: pad only to the bf16 sublane multiple (16), not 128
    - large batches: 256-row tiles amortize the ~0.35us/grid-step overhead
      and the MXU weight pushes
    - a single tile of >=32 rows is halved so both v7x TensorCores get work
      (no effect on v5e/v6e: 1 TC).
    """
    if b > 256:
        tile_b = 256
    else:
        tile_b = _round_up(max(b, 1), 16)
    b_pad = _round_up(b, tile_b)
    n_tiles = b_pad // tile_b
    if n_tiles == 1 and tile_b % 32 == 0:
        tile_b //= 2
        n_tiles = 2
    return tile_b, b_pad, n_tiles


# ----------------------------------------------------------------------------
# Fused kernel: backbone surrogate + CrossAttentionHead + MLP
# grid = (batch tiles [parallel], HIDDEN blocks [arbitrary, accumulated])
# ----------------------------------------------------------------------------
def _image_head_kernel(x_ref, w_in_ref, vecs_ref, w1_ref, b1_ref, w2_ref,
                       out_ref, xn_ref):
    j = pl.program_id(1)          # HIDDEN-block index (reduction axis, last)

    @pl.when(j == 0)
    def _():
        # packed resident vectors: rows = [b_in, query, ln_g, ln_b, b2, 0,0,0]
        vecs = vecs_ref[...]
        b_in, query = vecs[0:1, :], vecs[1:2, :]
        ln_g, ln_b, b2 = vecs[2:3, :], vecs[3:4, :], vecs[4:5, :]

        # backbone surrogate (global-avg-pool + linear) AND the length-1-KV
        # attention value/out projection, pre-folded into ONE matrix in
        # prepare_params() (no nonlinearity in between) -> single MXU matmul.
        a = jnp.dot(x_ref[...], w_in_ref[...],
                    preferred_element_type=jnp.float32) + b_in       # [T, E]

        # residual with the learnable query token + LayerNorm (dropout = id.)
        z = a + query
        mu = jnp.mean(z, axis=-1, keepdims=True)
        var = jnp.mean((z - mu) ** 2, axis=-1, keepdims=True)
        z = (z - mu) * jax.lax.rsqrt(var + LN_EPS) * ln_g + ln_b

        xn_ref[...] = z.astype(jnp.bfloat16)          # reused for every j
        # fc2 blocks accumulate on top of their bias
        out_ref[...] = jnp.broadcast_to(b2, out_ref.shape)

    # --- MLP tiled over HIDDEN: fc1 N-block -> exact-erf GELU -> fc2 K-block
    # accumulation.  Per-block GELU hides under MXU work instead of forming a
    # serial VPU bubble between the two full matmuls.
    h = jnp.dot(xn_ref[...], w1_ref[...],
                preferred_element_type=jnp.float32) + b1_ref[...]    # [T, HB]
    h = 0.5 * h * (1.0 + jax.lax.erf(h * _INV_SQRT2))                # exact GELU
    out_ref[...] += jnp.dot(h.astype(jnp.bfloat16), w2_ref[...],
                            preferred_element_type=jnp.float32)      # [T, E]
    # TODO(synk): emit bf16 output (cast at the last j) if downstream accepts
    # it; halves writeback bytes.


# ----------------------------------------------------------------------------
# Parameter folding (exact algebra, done once, f32 then cast to bf16)
# ----------------------------------------------------------------------------
def prepare_params(p, hw):
    """Folds done outside the kernel:
       - global-average-pool folded into a repeated feature-projection matrix
         (row order assumes channel-major NCHW flattening!),
       - attention v-proj and out-proj folded into one matrix (valid because
         the KV sequence length is exactly 1 -> softmax == 1, q/k projections
         cannot affect the output),
       - that folded matrix further folded into the backbone-surrogate matrix
         (valid only while the backbone is a LINEAR surrogate),
       - the five tiny [1, E] vectors packed into one (8, E) resident array.
    """
    wf_rep = jnp.repeat(p["wf"] / float(hw), hw, axis=0)         # [C*H*W, Dm]
    wvo = p["wv"] @ p["wo"]                                      # [Dm, E]
    bvo = p["bv"] @ p["wo"] + p["bo"]                            # [1, E]
    w_in = wf_rep @ wvo                                          # [C*H*W, E]
    b_in = p["bf"] @ wvo + bvo                                   # [1, E]
    vecs = jnp.concatenate(
        [b_in, p["query"], p["ln_g"], p["ln_b"], p["b2"],
         jnp.zeros((3, EMBED), jnp.float32)], axis=0)            # [8, E]
    return {
        "w_in": w_in.astype(jnp.bfloat16),
        "vecs": vecs.astype(jnp.float32),
        "w1": p["w1"].astype(jnp.bfloat16),
        "b1": p["b1"],
        "w2": p["w2"].astype(jnp.bfloat16),
    }


# ----------------------------------------------------------------------------
# Wrapper
# ----------------------------------------------------------------------------
def image_head_forward(x_nchw, fused):
    b, c, h, w = x_nchw.shape
    k_in = c * h * w
    x2d = x_nchw.reshape(b, k_in).astype(jnp.bfloat16)   # NCHW -> [B, C*H*W]

    tile_b, b_pad, n_tiles = _choose_tiling(b)
    if b_pad != b:
        x2d = jnp.pad(x2d, ((0, b_pad - b), (0, 0)))     # padded rows sliced off
    n_hid = HIDDEN // HID_BLK

    in_specs = [
        # streamed activation tile (bump to pl.Buffered(3) if profiling shows
        # this DMA exposed on v5e's slower HBM)
        pl.BlockSpec((tile_b, k_in), lambda i, j: (i, 0)),
        # fetched once, stay resident -> single buffer (no double-buffer waste)
        pl.BlockSpec((k_in, EMBED), lambda i, j: (0, 0),
                     pipeline_mode=pl.Buffered(1)),
        pl.BlockSpec((8, EMBED), lambda i, j: (0, 0),
                     pipeline_mode=pl.Buffered(1)),
        # HIDDEN-streamed MLP weight blocks (default double buffering so the
        # next block's DMA overlaps the current block's matmuls)
        pl.BlockSpec((EMBED, HID_BLK), lambda i, j: (0, j)),
        pl.BlockSpec((1, HID_BLK), lambda i, j: (0, j)),
        pl.BlockSpec((HID_BLK, EMBED), lambda i, j: (j, 0)),
    ]

    out = pl.pallas_call(
        _image_head_kernel,
        grid=(n_tiles, n_hid),
        in_specs=in_specs,
        out_specs=pl.BlockSpec((tile_b, EMBED), lambda i, j: (i, 0)),
        out_shape=jax.ShapeDtypeStruct((b_pad, EMBED), jnp.float32),
        scratch_shapes=[pltpu.VMEM((tile_b, EMBED), jnp.bfloat16)],  # LN output
        compiler_params=pltpu.CompilerParams(
            dimension_semantics=("parallel", "arbitrary"),
            # explicit scoped-VMEM budget; retune (and keep HIDDEN tiling)
            # when scaling to EMBED=1024 / HIDDEN=4096.
            vmem_limit_bytes=32 * 1024 * 1024,
        ),
    )(x2d, fused["w_in"], fused["vecs"], fused["w1"], fused["b1"], fused["w2"])
    return out[:b]                                 # == x.squeeze() in the module


# ----------------------------------------------------------------------------
# Deterministic parameter construction (synthetic weights, no checkpoint)
# ----------------------------------------------------------------------------
def init_params(key):
    ks = jax.random.split(key, 8)
    return {
        # backbone surrogate: pooled [C] -> model_embed_dim
        "wf": jax.random.normal(ks[0], (C, MODEL_EMBED), jnp.float32) * 0.5,
        "bf": jnp.zeros((1, MODEL_EMBED), jnp.float32),
        # CrossAttentionHead
        "query": jax.random.normal(ks[1], (1, EMBED), jnp.float32),  # torch.randn(1,1,E)
        "wv": jax.random.normal(ks[2], (MODEL_EMBED, EMBED), jnp.float32) * 0.1,
        "bv": jax.random.normal(ks[3], (1, EMBED), jnp.float32) * 0.1,
        "wo": jax.random.normal(ks[4], (EMBED, EMBED), jnp.float32) * 0.1,
        "bo": jax.random.normal(ks[5], (1, EMBED), jnp.float32) * 0.1,
        "ln_g": jnp.ones((1, EMBED), jnp.float32),
        "ln_b": jnp.zeros((1, EMBED), jnp.float32),
        # MLP
        "w1": jax.random.normal(ks[6], (EMBED, HIDDEN), jnp.float32) * 0.05,
        "b1": jnp.zeros((1, HIDDEN), jnp.float32),
        "w2": jax.random.normal(ks[7], (HIDDEN, EMBED), jnp.float32) * 0.05,
        "b2": jnp.zeros((1, EMBED), jnp.float32),
    }


# Plain-JAX reference using the SAME folded bf16 params (tight kernel check).
def reference_forward_folded(x_nchw, fused):
    b, c, h, w = x_nchw.shape
    x2d = x_nchw.reshape(b, c * h * w).astype(jnp.bfloat16)
    vecs = fused["vecs"]
    b_in, query = vecs[0:1], vecs[1:2]
    ln_g, ln_b, b2 = vecs[2:3], vecs[3:4], vecs[4:5]
    a = jnp.dot(x2d, fused["w_in"], preferred_element_type=jnp.float32) + b_in
    z = a + query
    mu = z.mean(-1, keepdims=True)
    var = ((z - mu) ** 2).mean(-1, keepdims=True)
    z = ((z - mu) * jax.lax.rsqrt(var + LN_EPS) * ln_g + ln_b).astype(jnp.bfloat16)
    hh = jnp.dot(z, fused["w1"], preferred_element_type=jnp.float32) + fused["b1"]
    hh = 0.5 * hh * (1.0 + jax.lax.erf(hh * _INV_SQRT2))
    return jnp.dot(hh.astype(jnp.bfloat16), fused["w2"],
                   preferred_element_type=jnp.float32) + b2


# Unfused f32 reference (original module math, no folds, no bf16) — validates
# the algebraic folds themselves; only bf16 rounding drift remains.
def reference_forward_unfused_f32(x_nchw, p):
    b = x_nchw.shape[0]
    pooled = x_nchw.reshape(b, C, H * W).mean(axis=-1)            # GAP surrogate
    feat = pooled @ p["wf"] + p["bf"]
    v = feat @ p["wv"] + p["bv"]                                  # softmax(len-1)==1
    attn = v @ p["wo"] + p["bo"]
    z = attn + p["query"]
    mu = z.mean(-1, keepdims=True)
    var = ((z - mu) ** 2).mean(-1, keepdims=True)
    z = (z - mu) * jax.lax.rsqrt(var + LN_EPS) * p["ln_g"] + p["ln_b"]
    hh = z @ p["w1"] + p["b1"]
    hh = 0.5 * hh * (1.0 + jax.lax.erf(hh * _INV_SQRT2))
    return hh @ p["w2"] + p["b2"]


if __name__ == "__main__":
    key = jax.random.PRNGKey(0)
    k_x, k_p = jax.random.split(key)
    x = jax.random.normal(k_x, (B, C, H, W), jnp.float32)   # NCHW, like PyTorch
    params = init_params(k_p)
    fused = prepare_params(params, H * W)

    out = image_head_forward(x, fused)
    out = jax.block_until_ready(out)
    assert out.shape == (B, EMBED)

    # 1) tight check: kernel == identical folded/bf16 math in plain JAX
    ref = reference_forward_folded(x, fused)
    np.testing.assert_allclose(np.asarray(out), np.asarray(ref),
                               rtol=1e-3, atol=1e-4)

    # 2) fold validation: kernel ~= unfused f32 module math (bf16 drift only)
    ref_f32 = reference_forward_unfused_f32(x, params)
    np.testing.assert_allclose(np.asarray(out), np.asarray(ref_f32),
                               rtol=5e-2, atol=1e-2)

    print("KERNEL_OK")
</pallas_src>

<mosaic_0001>
module attributes {stable_mosaic.version = 11 : i64} {
  func.func @_image_head_kernel(%arg0: i32, %arg1: i32, %arg2: memref<16x1024xbf16, #tpu.memory_space<vmem>>, %arg3: memref<1024x128xbf16, #tpu.memory_space<vmem>>, %arg4: memref<8x128xf32, #tpu.memory_space<vmem>>, %arg5: memref<128x256xbf16, #tpu.memory_space<vmem>>, %arg6: memref<1x256xf32, #tpu.memory_space<vmem>>, %arg7: memref<256x128xbf16, #tpu.memory_space<vmem>>, %arg8: memref<16x128xf32, #tpu.memory_space<vmem>>, %arg9: memref<16x128xbf16, #tpu.memory_space<vmem>>) attributes {dimension_semantics = [#tpu.dimension_semantics<parallel>, #tpu.dimension_semantics<arbitrary>], iteration_bounds = array<i64: 1, 2>, scalar_prefetch = 0 : i64, scratch_operands = 1 : i64, tpu.core_type = #tpu.core_type<tc>, window_params = [{transform_indices = @transform_0, window_bounds = array<i64: 16, 1024>}, {pipeline_mode = #tpu.pipeline_mode<synchronous>, transform_indices = @transform_1, window_bounds = array<i64: 1024, 128>}, {pipeline_mode = #tpu.pipeline_mode<synchronous>, transform_indices = @transform_2, window_bounds = array<i64: 8, 128>}, {transform_indices = @transform_3, window_bounds = array<i64: 128, 256>}, {transform_indices = @transform_4, window_bounds = array<i64: 1, 256>}, {transform_indices = @transform_5, window_bounds = array<i64: 256, 128>}, {transform_indices = @transform_6, window_bounds = array<i64: 16, 128>}]} {
    %c0_i32 = arith.constant 0 : i32
    %0 = arith.cmpi eq, %arg1, %c0_i32 : i32
    %1 = arith.extui %0 : i1 to i32
    %c0_i32_0 = arith.constant 0 : i32
    %2 = arith.cmpi ne, %1, %c0_i32_0 : i32
    scf.if %2 {
      %c0_16 = arith.constant 0 : index
      %c0_17 = arith.constant 0 : index
      %23 = vector.load %arg4[%c0_16, %c0_17] : memref<8x128xf32, #tpu.memory_space<vmem>>, vector<8x128xf32>
      %24 = vector.extract_strided_slice %23 {offsets = [0, 0], sizes = [1, 128], strides = [1, 1]} : vector<8x128xf32> to vector<1x128xf32>
      %25 = vector.extract_strided_slice %23 {offsets = [1, 0], sizes = [1, 128], strides = [1, 1]} : vector<8x128xf32> to vector<1x128xf32>
      %26 = vector.extract_strided_slice %23 {offsets = [2, 0], sizes = [1, 128], strides = [1, 1]} : vector<8x128xf32> to vector<1x128xf32>
      %27 = vector.extract_strided_slice %23 {offsets = [3, 0], sizes = [1, 128], strides = [1, 1]} : vector<8x128xf32> to vector<1x128xf32>
      %28 = vector.extract_strided_slice %23 {offsets = [4, 0], sizes = [1, 128], strides = [1, 1]} : vector<8x128xf32> to vector<1x128xf32>
      %c0_18 = arith.constant 0 : index
      %c0_19 = arith.constant 0 : index
      %29 = vector.load %arg2[%c0_18, %c0_19] : memref<16x1024xbf16, #tpu.memory_space<vmem>>, vector<16x1024xbf16>
      %c0_20 = arith.constant 0 : index
      %c0_21 = arith.constant 0 : index
      %30 = vector.load %arg3[%c0_20, %c0_21] : memref<1024x128xbf16, #tpu.memory_space<vmem>>, vector<1024x128xbf16>
      %cst_22 = arith.constant dense<0.000000e+00> : vector<16x128xf32>
      %31 = tpu.matmul %29, %30, %cst_22 {dimension_numbers = #tpu.dot_dimension_numbers<[1], [0], [0], [1], [0, 0, 1, 1], [], []>} : vector<16x1024xbf16>, vector<1024x128xbf16>, vector<16x128xf32> -> vector<16x128xf32>
      %32 = vector.broadcast %24 : vector<1x128xf32> to vector<16x128xf32>
      %33 = arith.addf %31, %32 : vector<16x128xf32>
      %34 = vector.broadcast %25 : vector<1x128xf32> to vector<16x128xf32>
      %35 = arith.addf %33, %34 : vector<16x128xf32>
      %cst_23 = arith.constant dense<0.000000e+00> : vector<16xf32>
      %36 = vector.multi_reduction <add>, %35, %cst_23 [1] : vector<16x128xf32> to vector<16xf32>
      %37 = vector.shape_cast %36 : vector<16xf32> to vector<16x1xf32>
      %cst_24 = arith.constant 1.280000e+02 : f32
      %38 = vector.broadcast %cst_24 : f32 to vector<16x1xf32>
      %39 = arith.divf %37, %38 : vector<16x1xf32>
      %40 = vector.broadcast %39 : vector<16x1xf32> to vector<16x128xf32>
      %41 = arith.subf %35, %40 : vector<16x128xf32>
      %42 = arith.mulf %41, %41 : vector<16x128xf32>
      %cst_25 = arith.constant dense<0.000000e+00> : vector<16xf32>
      %43 = vector.multi_reduction <add>, %42, %cst_25 [1] : vector<16x128xf32> to vector<16xf32>
      %44 = vector.shape_cast %43 : vector<16xf32> to vector<16x1xf32>
      %cst_26 = arith.constant 1.280000e+02 : f32
      %45 = vector.broadcast %cst_26 : f32 to vector<16x1xf32>
      %46 = arith.divf %44, %45 : vector<16x1xf32>
      %47 = vector.broadcast %39 : vector<16x1xf32> to vector<16x128xf32>
      %48 = arith.subf %35, %47 : vector<16x128xf32>
      %cst_27 = arith.constant 9.99999974E-6 : f32
      %49 = vector.broadcast %cst_27 : f32 to vector<16x1xf32>
      %50 = arith.addf %46, %49 : vector<16x1xf32>
      %51 = math.rsqrt %50 : vector<16x1xf32>
      %52 = vector.broadcast %51 : vector<16x1xf32> to vector<16x128xf32>
      %53 = arith.mulf %48, %52 : vector<16x128xf32>
      %54 = vector.broadcast %26 : vector<1x128xf32> to vector<16x128xf32>
      %55 = arith.mulf %53, %54 : vector<16x128xf32>
      %56 = vector.broadcast %27 : vector<1x128xf32> to vector<16x128xf32>
      %57 = arith.addf %55, %56 : vector<16x128xf32>
      %58 = arith.truncf %57 : vector<16x128xf32> to vector<16x128xbf16>
      %c0_28 = arith.constant 0 : index
      %c0_29 = arith.constant 0 : index
      %59 = vector.load %arg9[%c0_28, %c0_29] : memref<16x128xbf16, #tpu.memory_space<vmem>>, vector<16x128xbf16>
      tpu.vector_store %arg9[%c0_28, %c0_29], %58 {strides = array<i32>} : memref<16x128xbf16, #tpu.memory_space<vmem>>, vector<16x128xbf16>,
      %60 = vector.shape_cast %28 : vector<1x128xf32> to vector<1x128xf32>
      %61 = vector.broadcast %60 : vector<1x128xf32> to vector<16x128xf32>
      %c0_30 = arith.constant 0 : index
      %c0_31 = arith.constant 0 : index
      %62 = vector.load %arg8[%c0_30, %c0_31] : memref<16x128xf32, #tpu.memory_space<vmem>>, vector<16x128xf32>
      tpu.vector_store %arg8[%c0_30, %c0_31], %61 {strides = array<i32>} : memref<16x128xf32, #tpu.memory_space<vmem>>, vector<16x128xf32>,
    } else {
    }
    %c0 = arith.constant 0 : index
    %c0_1 = arith.constant 0 : index
    %3 = vector.load %arg9[%c0, %c0_1] : memref<16x128xbf16, #tpu.memory_space<vmem>>, vector<16x128xbf16>
    %c0_2 = arith.constant 0 : index
    %c0_3 = arith.constant 0 : index
    %4 = vector.load %arg5[%c0_2, %c0_3] : memref<128x256xbf16, #tpu.memory_space<vmem>>, vector<128x256xbf16>
    %cst = arith.constant dense<0.000000e+00> : vector<16x256xf32>
    %5 = tpu.matmul %3, %4, %cst {dimension_numbers = #tpu.dot_dimension_numbers<[1], [0], [0], [1], [0, 0, 1, 1], [], []>} : vector<16x128xbf16>, vector<128x256xbf16>, vector<16x256xf32> -> vector<16x256xf32>
    %c0_4 = arith.constant 0 : index
    %c0_5 = arith.constant 0 : index
    %6 = vector.load %arg6[%c0_4, %c0_5] : memref<1x256xf32, #tpu.memory_space<vmem>>, vector<1x256xf32>
    %7 = vector.broadcast %6 : vector<1x256xf32> to vector<16x256xf32>
    %8 = arith.addf %5, %7 : vector<16x256xf32>
    %cst_6 = arith.constant 5.000000e-01 : f32
    %9 = vector.broadcast %cst_6 : f32 to vector<16x256xf32>
    %10 = arith.mulf %9, %8 : vector<16x256xf32>
    %cst_7 = arith.constant 0.707106769 : f32
    %11 = vector.broadcast %cst_7 : f32 to vector<16x256xf32>
    %12 = arith.mulf %8, %11 : vector<16x256xf32>
    %13 = math.erf %12 : vector<16x256xf32>
    %cst_8 = arith.constant 1.000000e+00 : f32
    %14 = vector.broadcast %cst_8 : f32 to vector<16x256xf32>
    %15 = arith.addf %14, %13 : vector<16x256xf32>
    %16 = arith.mulf %10, %15 : vector<16x256xf32>
    %c0_9 = arith.constant 0 : index
    %c0_10 = arith.constant 0 : index
    %17 = vector.load %arg8[%c0_9, %c0_10] : memref<16x128xf32, #tpu.memory_space<vmem>>, vector<16x128xf32>
    %18 = arith.truncf %16 : vector<16x256xf32> to vector<16x256xbf16>
    %c0_11 = arith.constant 0 : index
    %c0_12 = arith.constant 0 : index
    %19 = vector.load %arg7[%c0_11, %c0_12] : memref<256x128xbf16, #tpu.memory_space<vmem>>, vector<256x128xbf16>
    %cst_13 = arith.constant dense<0.000000e+00> : vector<16x128xf32>
    %20 = tpu.matmul %18, %19, %cst_13 {dimension_numbers = #tpu.dot_dimension_numbers<[1], [0], [0], [1], [0, 0, 1, 1], [], []>} : vector<16x256xbf16>, vector<256x128xbf16>, vector<16x128xf32> -> vector<16x128xf32>
    %21 = arith.addf %17, %20 : vector<16x128xf32>
    %c0_14 = arith.constant 0 : index
    %c0_15 = arith.constant 0 : index
    %22 = vector.load %arg8[%c0_14, %c0_15] : memref<16x128xf32, #tpu.memory_space<vmem>>, vector<16x128xf32>
    tpu.vector_store %arg8[%c0_14, %c0_15], %21 {strides = array<i32>} : memref<16x128xf32, #tpu.memory_space<vmem>>, vector<16x128xf32>,
    return
  }
  func.func @transform_0(%arg0: i32, %arg1: i32) -> (i32, i32) {
    %c0_i32 = arith.constant 0 : i32
    %c0_i32_0 = arith.constant 0 : i32
    return %arg0, %c0_i32 : i32, i32
  }
  func.func @transform_1(%arg0: i32, %arg1: i32) -> (i32, i32) {
    %c0_i32 = arith.constant 0 : i32
    %c0_i32_0 = arith.constant 0 : i32
    %c0_i32_1 = arith.constant 0 : i32
    return %c0_i32, %c0_i32_0 : i32, i32
  }
  func.func @transform_2(%arg0: i32, %arg1: i32) -> (i32, i32) {
    %c0_i32 = arith.constant 0 : i32
    %c0_i32_0 = arith.constant 0 : i32
    %c0_i32_1 = arith.constant 0 : i32
    return %c0_i32, %c0_i32_0 : i32, i32
  }
  func.func @transform_3(%arg0: i32, %arg1: i32) -> (i32, i32) {
    %c0_i32 = arith.constant 0 : i32
    %c0_i32_0 = arith.constant 0 : i32
    return %c0_i32, %arg1 : i32, i32
  }
  func.func @transform_4(%arg0: i32, %arg1: i32) -> (i32, i32) {
    %c0_i32 = arith.constant 0 : i32
    %c0_i32_0 = arith.constant 0 : i32
    return %c0_i32, %arg1 : i32, i32
  }
  func.func @transform_5(%arg0: i32, %arg1: i32) -> (i32, i32) {
    %c0_i32 = arith.constant 0 : i32
    %c0_i32_0 = arith.constant 0 : i32
    return %arg1, %c0_i32 : i32, i32
  }
  func.func @transform_6(%arg0: i32, %arg1: i32) -> (i32, i32) {
    %c0_i32 = arith.constant 0 : i32
    %c0_i32_0 = arith.constant 0 : i32
    return %arg0, %c0_i32 : i32, i32
  }
}

</mosaic_0001>

<llo_original>
// kernel: tpu_custom_call.1
$region0: #{tpu_custom_call.1}
  #allocation0 [shape = 'u32[]', space=smem, size = 0x4, offset = 0x4, fixed_abs, tag = 'smem constant byte address 0x4 - core index']
  #allocation1 [shape = 'u32[144,128]{1,0:T(1,128)}', space=vmem, size = 0x12000, scoped, tag = 'internal scratch']
  #allocation2 [shape = 'bf16[16,128]{1,0:T(16,128)(2,1)}', space=vmem, size = 0x1000, scoped, tag = 'scratch operand']
  %s0 = inlined_call_operand.hbm [shape: bf16[16,1024], index: 0, kind: input, shape index: {}]
  %s1 = inlined_call_operand.hbm [shape: bf16[1024,128], index: 1, kind: input, shape index: {}]
  %s2 = inlined_call_operand.hbm [shape: f32[8,128], index: 2, kind: input, shape index: {}]
  %s3 = inlined_call_operand.hbm [shape: bf16[128,512], index: 3, kind: input, shape index: {}]
  %s4 = inlined_call_operand.vmem [shape: f32[1,512], index: 4, kind: input, shape index: {}]
  %s5 = inlined_call_operand.hbm [shape: bf16[512,128], index: 5, kind: input, shape index: {}]
  %s6 = inlined_call_operand.hbm [shape: f32[16,128], index: 6, kind: output, shape index: {}]
  %s7 = sld [smem:[#allocation0]]
  $region81: #{tpu_custom_call.1} parent=0
    _
  %s9 = ssub.s32 1, %s7
  %s10 = scalar_select 0, %s9, %s7
  $region1: #{tpu_custom_call.1} parent=0
    #allocation3 [shape = 'u8[32768]{0}', space=vmem, size = 0x8000, scoped, tag = 'input window, operand 0, single buffered']
    #allocation4 [shape = 's32[2]{0}', space=sflag, size = 0x8, scoped, tag = 'scoped memory for tpu_custom_call.1']
    #allocation5 [shape = 's32[2]{0}', space=sflag, size = 0x8, scoped, tag = 'scoped memory for tpu_custom_call.1']
    #allocation6 [shape = 'u8[262144]{0}', space=vmem, size = 0x40000, scoped, tag = 'input window, operand 1, single buffered']
    #allocation7 [shape = 's32[1]{0}', space=sflag, size = 0x4, scoped, tag = 'scoped memory for tpu_custom_call.1']
    #allocation8 [shape = 'u8[4096]{0}', space=vmem, size = 0x1000, scoped, tag = 'input window, operand 2, single buffered']
    #allocation9 [shape = 'u8[131072]{0}', space=vmem, size = 0x20000, scoped, tag = 'input window, operand 3']
    #allocation10 [shape = 's32[2]{0}', space=sflag, size = 0x8, scoped, tag = 'scoped memory for tpu_custom_call.1']
    #allocation11 [shape = 'u8[131072]{0}', space=vmem, size = 0x20000, scoped, tag = 'input window, operand 5']
    #allocation12 [shape = 'u8[8192]{0}', space=vmem, size = 0x2000, scoped, tag = 'output window, operand 0, single buffered']
    %11 = vsyncpa [#allocation4], 0
    %12 = vsyncpa [#allocation7], 0
    %13 = vsyncpa [#allocation10], 0
    %s14 = scalar_lea.sflag [#allocation10], 1
    %15 = vsyncpa %s14, 0
    %16 = vsyncpa [#allocation5], 0
    loop: start=0, step=1, limit=4
    $region2: #{tpu_custom_call.1} parent=1 // loop_pre_header
      _
    $region3: #{tpu_custom_call.1} parent=1 // loop_header
      %s18 = sphi 0, %s22
      %p19 = scmp.ge.s32.totalorder %s18, 4
      %s25 = sphi 0, %s37
      %s26 = sphi 0, %s33
      %s27 = sphi 0, %s25
      %s28 = sphi 0, %s26
      %s29 = sphi 0, %s27
      %s30 = sphi 0, %s28
      %s40 = sphi 0, %s42
      %s43 = sphi 0, %s40
      %s44 = sphi 0, %s43
      %s60 = sphi 0, %s44
      %s64 = sphi 0, %s64
      %s66 = sphi 0, %s64
      %s67 = sphi 0, %s66
      %s81 = sphi 0, %s67
      %s85 = sphi 0, %s85
      %s87 = sphi 0, %s85
      %s88 = sphi 0, %s87
      %s102 = sphi 0, %s88
      %s108 = sphi 0, %s110
      %s111 = sphi 0, %s108
      %s112 = sphi 0, %s111
      %s128 = sphi 0, %s112
      %s134 = sphi 0, %s136
      %s137 = sphi 0, %s134
      %s138 = sphi 0, %s137
      %s154 = sphi 0, %s138
      %s160 = sphi 0, %s162
      %s163 = sphi 0, %s160
      %s164 = sphi 0, %s163
      %s180 = sphi 0, %s164
      %s186 = sphi 0, %s188
      %s189 = sphi 0, %s186
      %s190 = sphi 0, %s189
      %s206 = sphi 0, %s190
    $region4: #{tpu_custom_call.1} parent=1 // loop_header_branch
      %21 = sbr.rel (%p19) target = $region8
    $region5: #{tpu_custom_call.1} parent=1 // loop_body
      %s23 = ssub.s32 %s18, 1
      %s24 = ssub.s32 %s18, 2
      %s31 = sadd.s32 1, %s26
      %p32 = scmp.ge.s32.totalorder %s31, 2
      %s33 = scalar_select %p32, 0, %s31
      %s34 = sadd.s32 1, %s25
      %s35 = scalar_select %p32, %s34, %s25
      %p36 = scmp.ge.s32.totalorder %s35, 1
      %s37 = scalar_select %p36, 0, %s35
      %s38 = ssub.s32 %s25, %s37
      %p39 = scmp.eq.s32.totalorder %s38, 0
      %s41 = sadd.s32 %s40, 1
      %s42 = scalar_select %p39, %s40, %s41
      %p45 = pneg %p39
      %p46 = scmp.eq.s32.totalorder %s18, 1
      %p47 = por %p45, %p46
      %p48 = scmp.ne.s32.totalorder %s40, %s43
      %p49 = scmp.eq.s32.totalorder %s18, 0
      %p50 = por %p48, %p49
      %p51 = scmp.ne.s32.totalorder %s40, %s43
      %p52 = scmp.eq.s32.totalorder %s23, 1
      %p53 = por %p51, %p52
      %p54 = scmp.ne.s32.totalorder %s43, %s44
      %p55 = scmp.eq.s32.totalorder %s23, 0
      %p56 = por %p54, %p55
      %p57 = scmp.ne.s32.totalorder %s43, %s44
      %p58 = scmp.eq.s32.totalorder %s24, 1
      %p59 = por %p57, %p58
      %p61 = scmp.ne.s32.totalorder %s44, %s60
      %p62 = scmp.eq.s32.totalorder %s24, 0
      %p63 = por %p61, %p62
      %s65 = sadd.s32 %s64, 1
      %p68 = scmp.eq.s32.totalorder %s18, 1
      %p69 = scmp.ne.s32.totalorder %s64, %s66
      %p70 = scmp.eq.s32.totalorder %s18, 0
      %p71 = por %p69, %p70
      %p72 = scmp.ne.s32.totalorder %s64, %s66
      %p73 = scmp.eq.s32.totalorder %s23, 1
      %p74 = por %p72, %p73
      %p75 = scmp.ne.s32.totalorder %s66, %s67
      %p76 = scmp.eq.s32.totalorder %s23, 0
      %p77 = por %p75, %p76
      %p78 = scmp.ne.s32.totalorder %s66, %s67
      %p79 = scmp.eq.s32.totalorder %s24, 1
      %p80 = por %p78, %p79
      %p82 = scmp.ne.s32.totalorder %s67, %s81
      %p83 = scmp.eq.s32.totalorder %s24, 0
      %p84 = por %p82, %p83
      %s86 = sadd.s32 %s85, 1
      %p89 = scmp.eq.s32.totalorder %s18, 1
      %p90 = scmp.ne.s32.totalorder %s85, %s87
      %p91 = scmp.eq.s32.totalorder %s18, 0
      %p92 = por %p90, %p91
      %p93 = scmp.ne.s32.totalorder %s85, %s87
      %p94 = scmp.eq.s32.totalorder %s23, 1
      %p95 = por %p93, %p94
      %p96 = scmp.ne.s32.totalorder %s87, %s88
      %p97 = scmp.eq.s32.totalorder %s23, 0
      %p98 = por %p96, %p97
      %p99 = scmp.ne.s32.totalorder %s87, %s88
      %p100 = scmp.eq.s32.totalorder %s24, 1
      %p101 = por %p99, %p100
      %p103 = scmp.ne.s32.totalorder %s88, %s102
      %p104 = scmp.eq.s32.totalorder %s24, 0
      %p105 = por %p103, %p104
      %s106 = ssub.s32 %s26, %s33
      %p107 = scmp.eq.s32.totalorder %s106, 0
      %s109 = sadd.s32 %s108, 1
      %s110 = scalar_select %p107, %s108, %s109
      %p113 = pneg %p107
      %p114 = scmp.eq.s32.totalorder %s18, 1
      %p115 = por %p113, %p114
      %p116 = scmp.ne.s32.totalorder %s108, %s111
      %p117 = scmp.eq.s32.totalorder %s18, 0
      %p118 = por %p116, %p117
      %p119 = scmp.ne.s32.totalorder %s108, %s111
      %p120 = scmp.eq.s32.totalorder %s23, 1
      %p121 = por %p119, %p120
      %p122 = scmp.ne.s32.totalorder %s111, %s112
      %p123 = scmp.eq.s32.totalorder %s23, 0
      %p124 = por %p122, %p123
      %p125 = scmp.ne.s32.totalorder %s111, %s112
      %p126 = scmp.eq.s32.totalorder %s24, 1
      %p127 = por %p125, %p126
      %p129 = scmp.ne.s32.totalorder %s112, %s128
      %p130 = scmp.eq.s32.totalorder %s24, 0
      %p131 = por %p129, %p130
      %s132 = ssub.s32 %s26, %s33
      %p133 = scmp.eq.s32.totalorder %s132, 0
      %s135 = sadd.s32 %s134, 1
      %s136 = scalar_select %p133, %s134, %s135
      %p139 = pneg %p133
      %p140 = scmp.eq.s32.totalorder %s18, 1
      %p141 = por %p139, %p140
      %p142 = scmp.ne.s32.totalorder %s134, %s137
      %p143 = scmp.eq.s32.totalorder %s18, 0
      %p144 = por %p142, %p143
      %p145 = scmp.ne.s32.totalorder %s134, %s137
      %p146 = scmp.eq.s32.totalorder %s23, 1
      %p147 = por %p145, %p146
      %p148 = scmp.ne.s32.totalorder %s137, %s138
      %p149 = scmp.eq.s32.totalorder %s23, 0
      %p150 = por %p148, %p149
      %p151 = scmp.ne.s32.totalorder %s137, %s138
      %p152 = scmp.eq.s32.totalorder %s24, 1
      %p153 = por %p151, %p152
      %p155 = scmp.ne.s32.totalorder %s138, %s154
      %p156 = scmp.eq.s32.totalorder %s24, 0
      %p157 = por %p155, %p156
      %s158 = ssub.s32 %s26, %s33
      %p159 = scmp.eq.s32.totalorder %s158, 0
      %s161 = sadd.s32 %s160, 1
      %s162 = scalar_select %p159, %s160, %s161
      %p165 = pneg %p159
      %p166 = scmp.eq.s32.totalorder %s18, 1
      %p167 = por %p165, %p166
      %p168 = scmp.ne.s32.totalorder %s160, %s163
      %p169 = scmp.eq.s32.totalorder %s18, 0
      %p170 = por %p168, %p169
      %p171 = scmp.ne.s32.totalorder %s160, %s163
      %p172 = scmp.eq.s32.totalorder %s23, 1
      %p173 = por %p171, %p172
      %p174 = scmp.ne.s32.totalorder %s163, %s164
      %p175 = scmp.eq.s32.totalorder %s23, 0
      %p176 = por %p174, %p175
      %p177 = scmp.ne.s32.totalorder %s163, %s164
      %p178 = scmp.eq.s32.totalorder %s24, 1
      %p179 = por %p177, %p178
      %p181 = scmp.ne.s32.totalorder %s164, %s180
      %p182 = scmp.eq.s32.totalorder %s24, 0
      %p183 = por %p181, %p182
      %s184 = ssub.s32 %s25, %s37
      %p185 = scmp.eq.s32.totalorder %s184, 0
      %s187 = sadd.s32 %s186, 1
      %s188 = scalar_select %p185, %s186, %s187
      %p191 = pneg %p185
      %p192 = scmp.eq.s32.totalorder %s18, 1
      %p193 = por %p191, %p192
      %p194 = scmp.ne.s32.totalorder %s186, %s189
      %p195 = scmp.eq.s32.totalorder %s18, 0
      %p196 = por %p194, %p195
      %p197 = scmp.ne.s32.totalorder %s186, %s189
      %p198 = scmp.eq.s32.totalorder %s23, 1
      %p199 = por %p197, %p198
      %p200 = scmp.ne.s32.totalorder %s189, %s190
      %p201 = scmp.eq.s32.totalorder %s23, 0
      %p202 = por %p200, %p201
      %p203 = scmp.ne.s32.totalorder %s189, %s190
      %p204 = scmp.eq.s32.totalorder %s24, 1
      %p205 = por %p203, %p204
      %p207 = scmp.ne.s32.totalorder %s190, %s206
      %p208 = scmp.eq.s32.totalorder %s24, 0
      %p209 = por %p207, %p208
      %p210 = scmp.le.s32.totalorder 1, %s18
      %p211 = scmp.lt.s32.totalorder %s18, 3
      %p212 = pnand %p210, %p211
      %p213 = pneg %p212
      // Predicated region
      $region9: #{tpu_custom_call.1} parent=5 // pred_check
        _
      $region10: #{tpu_custom_call.1} parent=5 // pred_check_branch
        %215 = sbr.rel (%p212) target = $region12
      $region11: #{tpu_custom_call.1} parent=5 // pred_region
        %s216 = ssub.s32 %s18, 1
        // Predicated region
        $region13: #{tpu_custom_call.1} parent=11 // pred_check
          %p217 = pneg %p56
        $region14: #{tpu_custom_call.1} parent=11 // pred_check_branch
          %219 = sbr.rel (%p217) target = $region16
        $region15: #{tpu_custom_call.1} parent=11 // pred_region
          %s220 = smul.u32 2, %s27
          %s222 = ssub.s32 1024, 1024
          %223 = vsyncadd [#allocation4], %s222
          %s224 = smul.addr %s220, 8
          %s225 = smul.addr %s224, 64
          %s226 = scalar_lea.hbm %s0, %s225
          %s227 = sshll.u32 [#allocation3], 4
          %s228 = int_to_ptr.vmem [resolvable:$true] %s227
          %233 = dma.hbm_to_vmem [thread:$0]  %s226, 1024, %s228, [#allocation4], 512, 512, 32
        $region16: #{tpu_custom_call.1} parent=11 // pred_fallthru
          _
        // Predicated region
        $region17: #{tpu_custom_call.1} parent=11 // pred_check
          %p234 = pneg %p77
        $region18: #{tpu_custom_call.1} parent=11 // pred_check_branch
          %236 = sbr.rel (%p234) target = $region20
        $region19: #{tpu_custom_call.1} parent=11 // pred_region
          %s238 = ssub.s32 8192, 8192
          %239 = vsyncadd [#allocation7], %s238
          %s240 = sshll.u32 [#allocation6], 4
          %s241 = int_to_ptr.vmem [resolvable:$true] %s240
          %246 = dma.hbm_to_vmem [thread:$0]  %s1, 8192, %s241, [#allocation7], 64, 64, 4
        $region20: #{tpu_custom_call.1} parent=11 // pred_fallthru
          _
        // Predicated region
        $region21: #{tpu_custom_call.1} parent=11 // pred_check
          %p247 = pneg %p98
        $region22: #{tpu_custom_call.1} parent=11 // pred_check_branch
          %249 = sbr.rel (%p247) target = $region24
        $region23: #{tpu_custom_call.1} parent=11 // pred_region
          %s251 = ssub.s32 128, 128
          %252 = vsyncadd [#allocation7], %s251
          %s254 = sshll.u32 [#allocation8], 4
          %s255 = int_to_ptr.vmem [resolvable:$true] %s254
          %257 = dma.hbm_to_vmem [thread:$0]  %s2, 128, %s255, [#allocation7]
        $region24: #{tpu_custom_call.1} parent=11 // pred_fallthru
          _
      $region12: #{tpu_custom_call.1} parent=5 // pred_fallthru
        _
      %p258 = scmp.lt.s32.totalorder %s18, 2
      // Predicated region
      $region25: #{tpu_custom_call.1} parent=5 // pred_check
        %p259 = pneg %p258
      $region26: #{tpu_custom_call.1} parent=5 // pred_check_branch
        %261 = sbr.rel (%p259) target = $region28
      $region27: #{tpu_custom_call.1} parent=5 // pred_region
        // Predicated region
        $region29: #{tpu_custom_call.1} parent=27 // pred_check
          %p262 = pneg %p118
        $region30: #{tpu_custom_call.1} parent=27 // pred_check_branch
          %264 = sbr.rel (%p262) target = $region32
        $region31: #{tpu_custom_call.1} parent=27 // pred_region
          %s265 = sand.u32 %s18, 1
          %s266 = scalar_lea.sflag [#allocation10], %s265
          %s267 = sand.u32 %s108, 1
          %s268 = smul.addr %s267, 128
          %s269 = scalar_lea.vmem [#allocation9], %s268
          %s270 = smul.u32 2, %s26
          %s272 = ssub.s32 2048, 2048
          %273 = vsyncadd %s266, %s272
          %s274 = smul.addr %s270, 64
          %s275 = scalar_lea.hbm %s3, %s274
          %s276 = sshll.u32 %s269, 4
          %s277 = int_to_ptr.vmem [resolvable:$true] %s276
          %282 = dma.hbm_to_vmem [thread:$0]  %s275, 2048, %s277, %s266, 256, 128, 8
        $region32: #{tpu_custom_call.1} parent=27 // pred_fallthru
          _
        // Predicated region
        $region33: #{tpu_custom_call.1} parent=27 // pred_check
          %p283 = pneg %p144
        $region34: #{tpu_custom_call.1} parent=27 // pred_check_branch
          %285 = sbr.rel (%p283) target = $region36
        $region35: #{tpu_custom_call.1} parent=27 // pred_region
          %s286 = smul.u32 2, %s26
          %p287 = scmp.lt.s32.totalorder %s286, 3
          %s288 = scalar_select %p287, %s286, 3
          %s289 = scalar_lea.vmem %s4, %s288
          %s290 = smul.u32 2, %s26
        $region36: #{tpu_custom_call.1} parent=27 // pred_fallthru
          _
        // Predicated region
        $region37: #{tpu_custom_call.1} parent=27 // pred_check
          %p291 = pneg %p170
        $region38: #{tpu_custom_call.1} parent=27 // pred_check_branch
          %293 = sbr.rel (%p291) target = $region40
        $region39: #{tpu_custom_call.1} parent=27 // pred_region
          %s294 = sand.u32 %s18, 1
          %s295 = scalar_lea.sflag [#allocation10], %s294
          %s296 = sand.u32 %s160, 1
          %s297 = smul.addr %s296, 128
          %s298 = scalar_lea.vmem [#allocation11], %s297
          %s299 = smul.u32 32, %s26
          %s301 = ssub.s32 2048, 2048
          %302 = vsyncadd %s295, %s301
          %s303 = smul.addr %s299, 64
          %s304 = scalar_lea.hbm %s5, %s303
          %s305 = sshll.u32 %s298, 4
          %s306 = int_to_ptr.vmem [resolvable:$true] %s305
          %311 = dma.hbm_to_vmem [thread:$0]  %s304, 2048, %s306, %s295, 64, 64, 4
        $region40: #{tpu_custom_call.1} parent=27 // pred_fallthru
          _
      $region28: #{tpu_custom_call.1} parent=5 // pred_fallthru
        _
      %p312 = scmp.le.s32.totalorder 1, %s18
      %p313 = scmp.lt.s32.totalorder %s18, 3
      %p314 = pnand %p312, %p313
      %p315 = pneg %p314
      // Predicated region
      $region41: #{tpu_custom_call.1} parent=5 // pred_check
        _
      $region42: #{tpu_custom_call.1} parent=5 // pred_check_branch
        %317 = sbr.rel (%p314) target = $region44
      $region43: #{tpu_custom_call.1} parent=5 // pred_region
        %s318 = ssub.s32 %s18, 1
        // Predicated region
        $region45: #{tpu_custom_call.1} parent=43 // pred_check
          %p319 = pneg %p56
        $region46: #{tpu_custom_call.1} parent=43 // pred_check_branch
          %321 = sbr.rel (%p319) target = $region48
        $region47: #{tpu_custom_call.1} parent=43 // pred_region
          %322 = dma.done [#allocation4], 1024
        $region48: #{tpu_custom_call.1} parent=43 // pred_fallthru
          _
        // Predicated region
        $region49: #{tpu_custom_call.1} parent=43 // pred_check
          %p323 = pneg %p77
        $region50: #{tpu_custom_call.1} parent=43 // pred_check_branch
          %325 = sbr.rel (%p323) target = $region52
        $region51: #{tpu_custom_call.1} parent=43 // pred_region
          %326 = dma.done [#allocation7], 8192
        $region52: #{tpu_custom_call.1} parent=43 // pred_fallthru
          _
        // Predicated region
        $region53: #{tpu_custom_call.1} parent=43 // pred_check
          %p327 = pneg %p98
        $region54: #{tpu_custom_call.1} parent=43 // pred_check_branch
          %329 = sbr.rel (%p327) target = $region56
        $region55: #{tpu_custom_call.1} parent=43 // pred_region
          %330 = dma.done [#allocation7], 128
        $region56: #{tpu_custom_call.1} parent=43 // pred_fallthru
          _
        %s331 = sand.u32 %s23, 1
        %s332 = scalar_lea.sflag [#allocation10], %s331
        %s333 = sand.u32 %s111, 1
        %s334 = smul.addr %s333, 128
        %s335 = scalar_lea.vmem [#allocation9], %s334
        // Predicated region
        $region57: #{tpu_custom_call.1} parent=43 // pred_check
          %p336 = pneg %p124
        $region58: #{tpu_custom_call.1} parent=43 // pred_check_branch
          %338 = sbr.rel (%p336) target = $region60
        $region59: #{tpu_custom_call.1} parent=43 // pred_region
          %339 = dma.done %s332, 2048
        $region60: #{tpu_custom_call.1} parent=43 // pred_fallthru
          _
        %s340 = sand.u32 %s23, 1
        %s341 = scalar_lea.sflag [#allocation10], %s340
        %s342 = sand.u32 %s163, 1
        %s343 = smul.addr %s342, 128
        %s344 = scalar_lea.vmem [#allocation11], %s343
        // Predicated region
        $region61: #{tpu_custom_call.1} parent=43 // pred_check
          %p345 = pneg %p176
        $region62: #{tpu_custom_call.1} parent=43 // pred_check_branch
          %347 = sbr.rel (%p345) target = $region64
        $region63: #{tpu_custom_call.1} parent=43 // pred_region
          %348 = dma.done %s341, 2048
        $region64: #{tpu_custom_call.1} parent=43 // pred_fallthru
          _
        %p349 = pneg %p56
        %p350 = pneg %p53
        %p351 = pneg %p77
        %p352 = pneg %p74
        %p353 = pneg %p98
        %p354 = pneg %p95
        %s355 = sand.u32 %s23, 1
        %s356 = scalar_lea.sflag [#allocation10], %s355
        %s357 = sand.u32 %s111, 1
        %s358 = smul.addr %s357, 128
        %s359 = scalar_lea.vmem [#allocation9], %s358
        %p360 = pneg %p124
        %p361 = pneg %p121
        %s362 = smul.u32 2, %s28
        %p363 = scmp.lt.s32.totalorder %s362, 3
        %s364 = scalar_select %p363, %s362, 3
        %s365 = scalar_lea.vmem %s4, %s364
        %p366 = pneg %p150
        %p367 = pneg %p147
        %s368 = sand.u32 %s23, 1
        %s369 = scalar_lea.sflag [#allocation10], %s368
        %s370 = sand.u32 %s163, 1
        %s371 = smul.addr %s370, 128
        %s372 = scalar_lea.vmem [#allocation11], %s371
        %p373 = pneg %p176
        %p374 = pneg %p173
        %p375 = pneg %p202
        %p376 = pneg %p199
        %s377 = smul.u32 2, %s27
        %s378 = smul.u32 2, %s28
        %s379 = smul.u32 2, %s28
        %p380 = scmp.lt.s32.totalorder %s379, 3
        %s381 = scalar_select %p380, %s379, 3
        %s382 = scalar_lea.vmem %s4, %s381
        %s383 = smul.u32 2, %s28
        %s384 = smul.u32 32, %s28
        %s385 = smul.u32 2, %s27
        %p387 = scmp.eq.s32.totalorder %s28, 0
        // Predicated region
        $region65: #{tpu_custom_call.1} parent=43 // pred_check
          %p388 = pneg %p387
        $region66: #{tpu_custom_call.1} parent=43 // pred_check_branch
          %390 = sbr.rel (%p388) target = $region68
        $region67: #{tpu_custom_call.1} parent=43 // pred_region
          %v391 = vld [vmem:[#allocation8] sm:$0xff]
          %v392 = vld [vmem:[#allocation3] sm:$0xff]
          %v393 = vld [vmem:[#allocation3 + $0x8] sm:$0xff]
          %v394 = vld [vmem:[#allocation3 + $0x10] sm:$0xff]
          %v395 = vld [vmem:[#allocation3 + $0x18] sm:$0xff]
          %v396 = vld [vmem:[#allocation3 + $0x20] sm:$0xff]
          %v397 = vld [vmem:[#allocation3 + $0x28] sm:$0xff]
          %v398 = vld [vmem:[#allocation3 + $0x30] sm:$0xff]
          %v399 = vld [vmem:[#allocation3 + $0x38] sm:$0xff]
          %v400 = vld [vmem:[#allocation6] sm:$0xf]
          %v401 = vld [vmem:[#allocation6 + $0x4] sm:$0xf]
          %v402 = vld [vmem:[#allocation6 + $0x8] sm:$0xf]
          %v403 = vld [vmem:[#allocation6 + $0xc] sm:$0xf]
          %v404 = vld [vmem:[#allocation6 + $0x10] sm:$0xf]
          %v405 = vld [vmem:[#allocation6 + $0x14] sm:$0xf]
          %v406 = vld [vmem:[#allocation6 + $0x18] sm:$0xf]
          %v407 = vld [vmem:[#allocation6 + $0x1c] sm:$0xf]
          %v408 = vld [vmem:[#allocation6 + $0x20] sm:$0xf]
          %v409 = vld [vmem:[#allocation6 + $0x24] sm:$0xf]
          %v410 = vld [vmem:[#allocation6 + $0x28] sm:$0xf]
          %v411 = vld [vmem:[#allocation6 + $0x2c] sm:$0xf]
          %v412 = vld [vmem:[#allocation6 + $0x30] sm:$0xf]
          %v413 = vld [vmem:[#allocation6 + $0x34] sm:$0xf]
          %v414 = vld [vmem:[#allocation6 + $0x38] sm:$0xf]
          %v415 = vld [vmem:[#allocation6 + $0x3c] sm:$0xf]
          %v416 = vld [vmem:[#allocation6 + $0x40] sm:$0xf]
          %v417 = vld [vmem:[#allocation6 + $0x44] sm:$0xf]
          %v418 = vld [vmem:[#allocation6 + $0x48] sm:$0xf]
          %v419 = vld [vmem:[#allocation6 + $0x4c] sm:$0xf]
          %v420 = vld [vmem:[#allocation6 + $0x50] sm:$0xf]
          %v421 = vld [vmem:[#allocation6 + $0x54] sm:$0xf]
          %v422 = vld [vmem:[#allocation6 + $0x58] sm:$0xf]
          %v423 = vld [vmem:[#allocation6 + $0x5c] sm:$0xf]
          %v424 = vld [vmem:[#allocation6 + $0x60] sm:$0xf]
          %v425 = vld [vmem:[#allocation6 + $0x64] sm:$0xf]
          %v426 = vld [vmem:[#allocation6 + $0x68] sm:$0xf]
          %v427 = vld [vmem:[#allocation6 + $0x6c] sm:$0xf]
          %v428 = vld [vmem:[#allocation6 + $0x70] sm:$0xf]
          %v429 = vld [vmem:[#allocation6 + $0x74] sm:$0xf]
          %v430 = vld [vmem:[#allocation6 + $0x78] sm:$0xf]
          %v431 = vld [vmem:[#allocation6 + $0x7c] sm:$0xf]
          %v432 = vld [vmem:[#allocation6 + $0x80] sm:$0xf]
          %v433 = vld [vmem:[#allocation6 + $0x84] sm:$0xf]
          %v434 = vld [vmem:[#allocation6 + $0x88] sm:$0xf]
          %v435 = vld [vmem:[#allocation6 + $0x8c] sm:$0xf]
          %v436 = vld [vmem:[#allocation6 + $0x90] sm:$0xf]
          %v437 = vld [vmem:[#allocation6 + $0x94] sm:$0xf]
          %v438 = vld [vmem:[#allocation6 + $0x98] sm:$0xf]
          %v439 = vld [vmem:[#allocation6 + $0x9c] sm:$0xf]
          %v440 = vld [vmem:[#allocation6 + $0xa0] sm:$0xf]
          %v441 = vld [vmem:[#allocation6 + $0xa4] sm:$0xf]
          %v442 = vld [vmem:[#allocation6 + $0xa8] sm:$0xf]
          %v443 = vld [vmem:[#allocation6 + $0xac] sm:$0xf]
          %v444 = vld [vmem:[#allocation6 + $0xb0] sm:$0xf]
          %v445 = vld [vmem:[#allocation6 + $0xb4] sm:$0xf]
          %v446 = vld [vmem:[#allocation6 + $0xb8] sm:$0xf]
          %v447 = vld [vmem:[#allocation6 + $0xbc] sm:$0xf]
          %v448 = vld [vmem:[#allocation6 + $0xc0] sm:$0xf]
          %v449 = vld [vmem:[#allocation6 + $0xc4] sm:$0xf]
          %v450 = vld [vmem:[#allocation6 + $0xc8] sm:$0xf]
          %v451 = vld [vmem:[#allocation6 + $0xcc] sm:$0xf]
          %v452 = vld [vmem:[#allocation6 + $0xd0] sm:$0xf]
          %v453 = vld [vmem:[#allocation6 + $0xd4] sm:$0xf]
          %v454 = vld [vmem:[#allocation6 + $0xd8] sm:$0xf]
          %v455 = vld [vmem:[#allocation6 + $0xdc] sm:$0xf]
          %v456 = vld [vmem:[#allocation6 + $0xe0] sm:$0xf]
          %v457 = vld [vmem:[#allocation6 + $0xe4] sm:$0xf]
          %v458 = vld [vmem:[#allocation6 + $0xe8] sm:$0xf]
          %v459 = vld [vmem:[#allocation6 + $0xec] sm:$0xf]
          %v460 = vld [vmem:[#allocation6 + $0xf0] sm:$0xf]
          %v461 = vld [vmem:[#allocation6 + $0xf4] sm:$0xf]
          %v462 = vld [vmem:[#allocation6 + $0xf8] sm:$0xf]
          %v463 = vld [vmem:[#allocation6 + $0xfc] sm:$0xf]
          %v464 = vld [vmem:[#allocation6 + $0x100] sm:$0xf]
          %v465 = vld [vmem:[#allocation6 + $0x104] sm:$0xf]
          %v466 = vld [vmem:[#allocation6 + $0x108] sm:$0xf]
          %v467 = vld [vmem:[#allocation6 + $0x10c] sm:$0xf]
          %v468 = vld [vmem:[#allocation6 + $0x110] sm:$0xf]
          %v469 = vld [vmem:[#allocation6 + $0x114] sm:$0xf]
          %v470 = vld [vmem:[#allocation6 + $0x118] sm:$0xf]
          %v471 = vld [vmem:[#allocation6 + $0x11c] sm:$0xf]
          %v472 = vld [vmem:[#allocation6 + $0x120] sm:$0xf]
          %v473 = vld [vmem:[#allocation6 + $0x124] sm:$0xf]
          %v474 = vld [vmem:[#allocation6 + $0x128] sm:$0xf]
          %v475 = vld [vmem:[#allocation6 + $0x12c] sm:$0xf]
          %v476 = vld [vmem:[#allocation6 + $0x130] sm:$0xf]
          %v477 = vld [vmem:[#allocation6 + $0x134] sm:$0xf]
          %v478 = vld [vmem:[#allocation6 + $0x138] sm:$0xf]
          %v479 = vld [vmem:[#allocation6 + $0x13c] sm:$0xf]
          %v480 = vld [vmem:[#allocation6 + $0x140] sm:$0xf]
          %v481 = vld [vmem:[#allocation6 + $0x144] sm:$0xf]
          %v482 = vld [vmem:[#allocation6 + $0x148] sm:$0xf]
          %v483 = vld [vmem:[#allocation6 + $0x14c] sm:$0xf]
          %v484 = vld [vmem:[#allocation6 + $0x150] sm:$0xf]
          %v485 = vld [vmem:[#allocation6 + $0x154] sm:$0xf]
          %v486 = vld [vmem:[#allocation6 + $0x158] sm:$0xf]
          %v487 = vld [vmem:[#allocation6 + $0x15c] sm:$0xf]
          %v488 = vld [vmem:[#allocation6 + $0x160] sm:$0xf]
          %v489 = vld [vmem:[#allocation6 + $0x164] sm:$0xf]
          %v490 = vld [vmem:[#allocation6 + $0x168] sm:$0xf]
          %v491 = vld [vmem:[#allocation6 + $0x16c] sm:$0xf]
          %v492 = vld [vmem:[#allocation6 + $0x170] sm:$0xf]
          %v493 = vld [vmem:[#allocation6 + $0x174] sm:$0xf]
          %v494 = vld [vmem:[#allocation6 + $0x178] sm:$0xf]
          %v495 = vld [vmem:[#allocation6 + $0x17c] sm:$0xf]
          %v496 = vld [vmem:[#allocation6 + $0x180] sm:$0xf]
          %v497 = vld [vmem:[#allocation6 + $0x184] sm:$0xf]
          %v498 = vld [vmem:[#allocation6 + $0x188] sm:$0xf]
          %v499 = vld [vmem:[#allocation6 + $0x18c] sm:$0xf]
          %v500 = vld [vmem:[#allocation6 + $0x190] sm:$0xf]
          %v501 = vld [vmem:[#allocation6 + $0x194] sm:$0xf]
          %v502 = vld [vmem:[#allocation6 + $0x198] sm:$0xf]
          %v503 = vld [vmem:[#allocation6 + $0x19c] sm:$0xf]
          %v504 = vld [vmem:[#allocation6 + $0x1a0] sm:$0xf]
          %v505 = vld [vmem:[#allocation6 + $0x1a4] sm:$0xf]
          %v506 = vld [vmem:[#allocation6 + $0x1a8] sm:$0xf]
          %v507 = vld [vmem:[#allocation6 + $0x1ac] sm:$0xf]
          %v508 = vld [vmem:[#allocation6 + $0x1b0] sm:$0xf]
          %v509 = vld [vmem:[#allocation6 + $0x1b4] sm:$0xf]
          %v510 = vld [vmem:[#allocation6 + $0x1b8] sm:$0xf]
          %v511 = vld [vmem:[#allocation6 + $0x1bc] sm:$0xf]
          %v512 = vld [vmem:[#allocation6 + $0x1c0] sm:$0xf]
          %v513 = vld [vmem:[#allocation6 + $0x1c4] sm:$0xf]
          %v514 = vld [vmem:[#allocation6 + $0x1c8] sm:$0xf]
          %v515 = vld [vmem:[#allocation6 + $0x1cc] sm:$0xf]
          %v516 = vld [vmem:[#allocation6 + $0x1d0] sm:$0xf]
          %v517 = vld [vmem:[#allocation6 + $0x1d4] sm:$0xf]
          %v518 = vld [vmem:[#allocation6 + $0x1d8] sm:$0xf]
          %v519 = vld [vmem:[#allocation6 + $0x1dc] sm:$0xf]
          %v520 = vld [vmem:[#allocation6 + $0x1e0] sm:$0xf]
          %v521 = vld [vmem:[#allocation6 + $0x1e4] sm:$0xf]
          %v522 = vld [vmem:[#allocation6 + $0x1e8] sm:$0xf]
          %v523 = vld [vmem:[#allocation6 + $0x1ec] sm:$0xf]
          %v524 = vld [vmem:[#allocation6 + $0x1f0] sm:$0xf]
          %v525 = vld [vmem:[#allocation6 + $0x1f4] sm:$0xf]
          %v526 = vld [vmem:[#allocation6 + $0x1f8] sm:$0xf]
          %v527 = vld [vmem:[#allocation6 + $0x1fc] sm:$0xf]
          %v528 = vlaneseq
          %v529 = vshrl.u32 %v528, 7
          %v530 = vsub.s32 0, %v529
          %v531 = vrot.slane %v391, %v530
          %v540 = vunpack.c.l.b16 %v392
          %v541 = vunpack.c.h.b16 %v392
          %v542 = vunpack.c.l.b16 %v393
          %v543 = vunpack.c.h.b16 %v393
          %v544 = vunpack.c.l.b16 %v394
          %v545 = vunpack.c.h.b16 %v394
          %v546 = vunpack.c.l.b16 %v395
          %v547 = vunpack.c.h.b16 %v395
          %v548 = vunpack.c.l.b16 %v396
          %v549 = vunpack.c.h.b16 %v396
          %v550 = vunpack.c.l.b16 %v397
          %v551 = vunpack.c.h.b16 %v397
          %v552 = vunpack.c.l.b16 %v398
          %v553 = vunpack.c.h.b16 %v398
          %v554 = vunpack.c.l.b16 %v399
          %v555 = vunpack.c.h.b16 %v399
          %v556 = vpack.c.b16 %v548, %v540
          %v557 = vpack.c.b16 %v549, %v541
          %v558 = vpack.c.b16 %v550, %v542
          %v559 = vpack.c.b16 %v551, %v543
          %v560 = vpack.c.b16 %v552, %v544
          %v561 = vpack.c.b16 %v553, %v545
          %v562 = vpack.c.b16 %v554, %v546
          %v563 = vpack.c.b16 %v555, %v547
          %v700 = vunpack.c.l.b16 %v400
          %v701 = vunpack.c.l.b16 %v401
          %v702 = vunpack.c.l.b16 %v402
          %v703 = vunpack.c.l.b16 %v403
          %v704 = vunpack.c.l.b16 %v404
          %v705 = vunpack.c.l.b16 %v405
          %v706 = vunpack.c.l.b16 %v406
          %v707 = vunpack.c.l.b16 %v407
          %v708 = vunpack.c.l.b16 %v408
          %v709 = vunpack.c.l.b16 %v409
          %v710 = vunpack.c.l.b16 %v410
          %v711 = vunpack.c.l.b16 %v411
          %v712 = vunpack.c.l.b16 %v412
          %v713 = vunpack.c.l.b16 %v413
          %v714 = vunpack.c.l.b16 %v414
          %v715 = vunpack.c.l.b16 %v415
          %v716 = vunpack.c.l.b16 %v416
          %v717 = vunpack.c.l.b16 %v417
          %v718 = vunpack.c.l.b16 %v418
          %v719 = vunpack.c.l.b16 %v419
          %v720 = vunpack.c.l.b16 %v420
          %v721 = vunpack.c.l.b16 %v421
          %v722 = vunpack.c.l.b16 %v422
          %v723 = vunpack.c.l.b16 %v423
          %v724 = vunpack.c.l.b16 %v424
          %v725 = vunpack.c.l.b16 %v425
          %v726 = vunpack.c.l.b16 %v426
          %v727 = vunpack.c.l.b16 %v427
          %v728 = vunpack.c.l.b16 %v428
          %v729 = vunpack.c.l.b16 %v429
          %v730 = vunpack.c.l.b16 %v430
          %v731 = vunpack.c.l.b16 %v431
          %v732 = vunpack.c.l.b16 %v432
          %v733 = vunpack.c.l.b16 %v433
          %v734 = vunpack.c.l.b16 %v434
          %v735 = vunpack.c.l.b16 %v435
          %v736 = vunpack.c.l.b16 %v436
          %v737 = vunpack.c.l.b16 %v437
          %v738 = vunpack.c.l.b16 %v438
          %v739 = vunpack.c.l.b16 %v439
          %v740 = vunpack.c.l.b16 %v440
          %v741 = vunpack.c.l.b16 %v441
          %v742 = vunpack.c.l.b16 %v442
          %v743 = vunpack.c.l.b16 %v443
          %v744 = vunpack.c.l.b16 %v444
          %v745 = vunpack.c.l.b16 %v445
          %v746 = vunpack.c.l.b16 %v446
          %v747 = vunpack.c.l.b16 %v447
          %v748 = vunpack.c.l.b16 %v448
          %v749 = vunpack.c.l.b16 %v449
          %v750 = vunpack.c.l.b16 %v450
          %v751 = vunpack.c.l.b16 %v451
          %v752 = vunpack.c.l.b16 %v452
          %v753 = vunpack.c.l.b16 %v453
          %v754 = vunpack.c.l.b16 %v454
          %v755 = vunpack.c.l.b16 %v455
          %v756 = vunpack.c.l.b16 %v456
          %v757 = vunpack.c.l.b16 %v457
          %v758 = vunpack.c.l.b16 %v458
          %v759 = vunpack.c.l.b16 %v459
          %v760 = vunpack.c.l.b16 %v460
          %v761 = vunpack.c.l.b16 %v461
          %v762 = vunpack.c.l.b16 %v462
          %v763 = vunpack.c.l.b16 %v463
          %v764 = vunpack.c.l.b16 %v464
          %v765 = vunpack.c.l.b16 %v465
          %v766 = vunpack.c.l.b16 %v466
          %v767 = vunpack.c.l.b16 %v467
          %v768 = vunpack.c.l.b16 %v468
          %v769 = vunpack.c.l.b16 %v469
          %v770 = vunpack.c.l.b16 %v470
          %v771 = vunpack.c.l.b16 %v471
          %v772 = vunpack.c.l.b16 %v472
          %v773 = vunpack.c.l.b16 %v473
          %v774 = vunpack.c.l.b16 %v474
          %v775 = vunpack.c.l.b16 %v475
          %v776 = vunpack.c.l.b16 %v476
          %v777 = vunpack.c.l.b16 %v477
          %v778 = vunpack.c.l.b16 %v478
          %v779 = vunpack.c.l.b16 %v479
          %v780 = vunpack.c.l.b16 %v480
          %v781 = vunpack.c.l.b16 %v481
          %v782 = vunpack.c.l.b16 %v482
          %v783 = vunpack.c.l.b16 %v483
          %v784 = vunpack.c.l.b16 %v484
          %v785 = vunpack.c.l.b16 %v485
          %v786 = vunpack.c.l.b16 %v486
          %v787 = vunpack.c.l.b16 %v487
          %v788 = vunpack.c.l.b16 %v488
          %v789 = vunpack.c.l.b16 %v489
          %v790 = vunpack.c.l.b16 %v490
          %v791 = vunpack.c.l.b16 %v491
          %v792 = vunpack.c.l.b16 %v492
          %v793 = vunpack.c.l.b16 %v493
          %v794 = vunpack.c.l.b16 %v494
          %v795 = vunpack.c.l.b16 %v495
          %v796 = vunpack.c.l.b16 %v496
          %v797 = vunpack.c.l.b16 %v497
          %v798 = vunpack.c.l.b16 %v498
          %v799 = vunpack.c.l.b16 %v499
          %v800 = vunpack.c.l.b16 %v500
          %v801 = vunpack.c.l.b16 %v501
          %v802 = vunpack.c.l.b16 %v502
          %v803 = vunpack.c.l.b16 %v503
          %v804 = vunpack.c.l.b16 %v504
          %v805 = vunpack.c.l.b16 %v505
          %v806 = vunpack.c.l.b16 %v506
          %v807 = vunpack.c.l.b16 %v507
          %v808 = vunpack.c.l.b16 %v508
          %v809 = vunpack.c.l.b16 %v509
          %v810 = vunpack.c.l.b16 %v510
          %v811 = vunpack.c.l.b16 %v511
          %v812 = vunpack.c.l.b16 %v512
          %v813 = vunpack.c.l.b16 %v513
          %v814 = vunpack.c.l.b16 %v514
          %v815 = vunpack.c.l.b16 %v515
          %v816 = vunpack.c.l.b16 %v516
          %v817 = vunpack.c.l.b16 %v517
          %v818 = vunpack.c.l.b16 %v518
          %v819 = vunpack.c.l.b16 %v519
          %v820 = vunpack.c.l.b16 %v520
          %v821 = vunpack.c.l.b16 %v521
          %v822 = vunpack.c.l.b16 %v522
          %v823 = vunpack.c.l.b16 %v523
          %v824 = vunpack.c.l.b16 %v524
          %v825 = vunpack.c.l.b16 %v525
          %v826 = vunpack.c.l.b16 %v526
          %v827 = vunpack.c.l.b16 %v527
          %v828 = vpack.c.b16 %v701, %v700
          %v829 = vpack.c.b16 %v703, %v702
          %v830 = vpack.c.b16 %v705, %v704
          %v831 = vpack.c.b16 %v707, %v706
          %v832 = vpack.c.b16 %v709, %v708
          %v833 = vpack.c.b16 %v711, %v710
          %v834 = vpack.c.b16 %v713, %v712
          %v835 = vpack.c.b16 %v715, %v714
          %v836 = vpack.c.b16 %v717, %v716
          %v837 = vpack.c.b16 %v719, %v718
          %v838 = vpack.c.b16 %v721, %v720
          %v839 = vpack.c.b16 %v723, %v722
          %v840 = vpack.c.b16 %v725, %v724
          %v841 = vpack.c.b16 %v727, %v726
          %v842 = vpack.c.b16 %v729, %v728
          %v843 = vpack.c.b16 %v731, %v730
          %v844 = vpack.c.b16 %v733, %v732
          %v845 = vpack.c.b16 %v735, %v734
          %v846 = vpack.c.b16 %v737, %v736
          %v847 = vpack.c.b16 %v739, %v738
          %v848 = vpack.c.b16 %v741, %v740
          %v849 = vpack.c.b16 %v743, %v742
          %v850 = vpack.c.b16 %v745, %v744
          %v851 = vpack.c.b16 %v747, %v746
          %v852 = vpack.c.b16 %v749, %v748
          %v853 = vpack.c.b16 %v751, %v750
          %v854 = vpack.c.b16 %v753, %v752
          %v855 = vpack.c.b16 %v755, %v754
          %v856 = vpack.c.b16 %v757, %v756
          %v857 = vpack.c.b16 %v759, %v758
          %v858 = vpack.c.b16 %v761, %v760
          %v859 = vpack.c.b16 %v763, %v762
          %v860 = vpack.c.b16 %v765, %v764
          %v861 = vpack.c.b16 %v767, %v766
          %v862 = vpack.c.b16 %v769, %v768
          %v863 = vpack.c.b16 %v771, %v770
          %v864 = vpack.c.b16 %v773, %v772
          %v865 = vpack.c.b16 %v775, %v774
          %v866 = vpack.c.b16 %v777, %v776
          %v867 = vpack.c.b16 %v779, %v778
          %v868 = vpack.c.b16 %v781, %v780
          %v869 = vpack.c.b16 %v783, %v782
          %v870 = vpack.c.b16 %v785, %v784
          %v871 = vpack.c.b16 %v787, %v786
          %v872 = vpack.c.b16 %v789, %v788
          %v873 = vpack.c.b16 %v791, %v790
          %v874 = vpack.c.b16 %v793, %v792
          %v875 = vpack.c.b16 %v795, %v794
          %v876 = vpack.c.b16 %v797, %v796
          %v877 = vpack.c.b16 %v799, %v798
          %v878 = vpack.c.b16 %v801, %v800
          %v879 = vpack.c.b16 %v803, %v802
          %v880 = vpack.c.b16 %v805, %v804
          %v881 = vpack.c.b16 %v807, %v806
          %v882 = vpack.c.b16 %v809, %v808
          %v883 = vpack.c.b16 %v811, %v810
          %v884 = vpack.c.b16 %v813, %v812
          %v885 = vpack.c.b16 %v815, %v814
          %v886 = vpack.c.b16 %v817, %v816
          %v887 = vpack.c.b16 %v819, %v818
          %v888 = vpack.c.b16 %v821, %v820
          %v889 = vpack.c.b16 %v823, %v822
          %v890 = vpack.c.b16 %v825, %v824
          %v891 = vpack.c.b16 %v827, %v826
          %956 = vmatprep.subr.bf16.mxu0 0
          %957 = vmatpush1.bf16.msra.mxu0 %v828
          %958 = vmatprep.subr.bf16.mxu0 0
          %959 = vmatpush1.bf16.msra.mxu0 %v829
          %960 = vmatprep.subr.bf16.mxu0 0
          %961 = vmatpush1.bf16.msra.mxu0 %v830
          %962 = vmatprep.subr.bf16.mxu0 0
          %963 = vmatpush1.bf16.msra.mxu0 %v831
          %964 = vmatprep.subr.bf16.mxu0 0
          %965 = vmatpush1.bf16.msra.mxu0 %v832
          %966 = vmatprep.subr.bf16.mxu0 0
          %967 = vmatpush1.bf16.msra.mxu0 %v833
          %968 = vmatprep.subr.bf16.mxu0 0
          %969 = vmatpush1.bf16.msra.mxu0 %v834
          %970 = vmatprep.subr.bf16.mxu0 0
          %971 = vmatpush1.bf16.msra.mxu0 %v835
          %972 = vmatprep.subr.bf16.mxu0 0
          %973 = vmatpush1.bf16.msra.mxu0 %v836
          %974 = vmatprep.subr.bf16.mxu0 0
          %975 = vmatpush1.bf16.msra.mxu0 %v837
          %976 = vmatprep.subr.bf16.mxu0 0
          %977 = vmatpush1.bf16.msra.mxu0 %v838
          %978 = vmatprep.subr.bf16.mxu0 0
          %979 = vmatpush1.bf16.msra.mxu0 %v839
          %980 = vmatprep.subr.bf16.mxu0 0
          %981 = vmatpush1.bf16.msra.mxu0 %v840
          %982 = vmatprep.subr.bf16.mxu0 0
          %983 = vmatpush1.bf16.msra.mxu0 %v841
          %984 = vmatprep.subr.bf16.mxu0 0
          %985 = vmatpush1.bf16.msra.mxu0 %v842
          %986 = vmatprep.subr.bf16.mxu0 0
          %987 = vmatpush1.bf16.msra.mxu0 %v843
          %988 = vmatprep.mubr.bf16.mxu0 %v557
          %989 = vmatmul.mubr.bf16.gmra.mrb[0].mxu0 %v556
          %v990 = vpop.f32.mrb[0].mxu0
          %v991 = vadd.f32 %v531, %v990
          %v992 = vpop.f32.mrb[0].mxu0
          %v993 = vpop.f32.mrb[0].mxu0
          %v994 = vadd.f32 %v531, %v993
          %v995 = vpop.f32.mrb[0].mxu0
          %996 = vdwg.mxu0
          %997 = vmatprep.subr.bf16.mxu0 0
          %998 = vmatpush1.bf16.msra.mxu0 %v844
          %999 = vmatprep.subr.bf16.mxu0 0
          %1000 = vmatpush1.bf16.msra.mxu0 %v845
          %1001 = vmatprep.subr.bf16.mxu0 0
          %1002 = vmatpush1.bf16.msra.mxu0 %v846
          %1003 = vmatprep.subr.bf16.mxu0 0
          %1004 = vmatpush1.bf16.msra.mxu0 %v847
          %1005 = vmatprep.subr.bf16.mxu0 0
          %1006 = vmatpush1.bf16.msra.mxu0 %v848
          %1007 = vmatprep.subr.bf16.mxu0 0
          %1008 = vmatpush1.bf16.msra.mxu0 %v849
          %1009 = vmatprep.subr.bf16.mxu0 0
          %1010 = vmatpush1.bf16.msra.mxu0 %v850
          %1011 = vmatprep.subr.bf16.mxu0 0
          %1012 = vmatpush1.bf16.msra.mxu0 %v851
          %1013 = vmatprep.subr.bf16.mxu0 0
          %1014 = vmatpush1.bf16.msra.mxu0 %v852
          %1015 = vmatprep.subr.bf16.mxu0 0
          %1016 = vmatpush1.bf16.msra.mxu0 %v853
          %1017 = vmatprep.subr.bf16.mxu0 0
          %1018 = vmatpush1.bf16.msra.mxu0 %v854
          %1019 = vmatprep.subr.bf16.mxu0 0
          %1020 = vmatpush1.bf16.msra.mxu0 %v855
          %1021 = vmatprep.subr.bf16.mxu0 0
          %1022 = vmatpush1.bf16.msra.mxu0 %v856
          %1023 = vmatprep.subr.bf16.mxu0 0
          %1024 = vmatpush1.bf16.msra.mxu0 %v857
          %1025 = vmatprep.subr.bf16.mxu0 0
          %1026 = vmatpush1.bf16.msra.mxu0 %v858
          %1027 = vmatprep.subr.bf16.mxu0 0
          %1028 = vmatpush1.bf16.msra.mxu0 %v859
          %1029 = vmatprep.mubr.bf16.mxu0 %v559
          %1030 = vmatmul.mubr.bf16.gmra.mrb[0].mxu0 %v558
          %v1031 = vpop.f32.mrb[0].mxu0
          %v1032 = vadd.f32 %v991, %v1031
          %v1033 = vpop.f32.mrb[0].mxu0
          %v1034 = vpop.f32.mrb[0].mxu0
          %v1035 = vadd.f32 %v994, %v1034
          %v1036 = vpop.f32.mrb[0].mxu0
          %1037 = vdwg.mxu0
          %1038 = vmatprep.subr.bf16.mxu0 0
          %1039 = vmatpush1.bf16.msra.mxu0 %v860
          %1040 = vmatprep.subr.bf16.mxu0 0
          %1041 = vmatpush1.bf16.msra.mxu0 %v861
          %1042 = vmatprep.subr.bf16.mxu0 0
          %1043 = vmatpush1.bf16.msra.mxu0 %v862
          %1044 = vmatprep.subr.bf16.mxu0 0
          %1045 = vmatpush1.bf16.msra.mxu0 %v863
          %1046 = vmatprep.subr.bf16.mxu0 0
          %1047 = vmatpush1.bf16.msra.mxu0 %v864
          %1048 = vmatprep.subr.bf16.mxu0 0
          %1049 = vmatpush1.bf16.msra.mxu0 %v865
          %1050 = vmatprep.subr.bf16.mxu0 0
          %1051 = vmatpush1.bf16.msra.mxu0 %v866
          %1052 = vmatprep.subr.bf16.mxu0 0
          %1053 = vmatpush1.bf16.msra.mxu0 %v867
          %1054 = vmatprep.subr.bf16.mxu0 0
          %1055 = vmatpush1.bf16.msra.mxu0 %v868
          %1056 = vmatprep.subr.bf16.mxu0 0
          %1057 = vmatpush1.bf16.msra.mxu0 %v869
          %1058 = vmatprep.subr.bf16.mxu0 0
          %1059 = vmatpush1.bf16.msra.mxu0 %v870
          %1060 = vmatprep.subr.bf16.mxu0 0
          %1061 = vmatpush1.bf16.msra.mxu0 %v871
          %1062 = vmatprep.subr.bf16.mxu0 0
          %1063 = vmatpush1.bf16.msra.mxu0 %v872
          %1064 = vmatprep.subr.bf16.mxu0 0
          %1065 = vmatpush1.bf16.msra.mxu0 %v873
          %1066 = vmatprep.subr.bf16.mxu0 0
          %1067 = vmatpush1.bf16.msra.mxu0 %v874
          %1068 = vmatprep.subr.bf16.mxu0 0
          %1069 = vmatpush1.bf16.msra.mxu0 %v875
          %1070 = vmatprep.mubr.bf16.mxu0 %v561
          %1071 = vmatmul.mubr.bf16.gmra.mrb[0].mxu0 %v560
          %v1072 = vpop.f32.mrb[0].mxu0
          %v1073 = vadd.f32 %v1032, %v1072
          %v1074 = vpop.f32.mrb[0].mxu0
          %v1075 = vpop.f32.mrb[0].mxu0
          %v1076 = vadd.f32 %v1035, %v1075
          %v1077 = vpop.f32.mrb[0].mxu0
          %1078 = vdwg.mxu0
          %1079 = vmatprep.subr.bf16.mxu0 0
          %1080 = vmatpush1.bf16.msra.mxu0 %v876
          %1081 = vmatprep.subr.bf16.mxu0 0
          %1082 = vmatpush1.bf16.msra.mxu0 %v877
          %1083 = vmatprep.subr.bf16.mxu0 0
          %1084 = vmatpush1.bf16.msra.mxu0 %v878
          %1085 = vmatprep.subr.bf16.mxu0 0
          %1086 = vmatpush1.bf16.msra.mxu0 %v879
          %1087 = vmatprep.subr.bf16.mxu0 0
          %1088 = vmatpush1.bf16.msra.mxu0 %v880
          %1089 = vmatprep.subr.bf16.mxu0 0
          %1090 = vmatpush1.bf16.msra.mxu0 %v881
          %1091 = vmatprep.subr.bf16.mxu0 0
          %1092 = vmatpush1.bf16.msra.mxu0 %v882
          %1093 = vmatprep.subr.bf16.mxu0 0
          %1094 = vmatpush1.bf16.msra.mxu0 %v883
          %1095 = vmatprep.subr.bf16.mxu0 0
          %1096 = vmatpush1.bf16.msra.mxu0 %v884
          %1097 = vmatprep.subr.bf16.mxu0 0
          %1098 = vmatpush1.bf16.msra.mxu0 %v885
          %1099 = vmatprep.subr.bf16.mxu0 0
          %1100 = vmatpush1.bf16.msra.mxu0 %v886
          %1101 = vmatprep.subr.bf16.mxu0 0
          %1102 = vmatpush1.bf16.msra.mxu0 %v887
          %1103 = vmatprep.subr.bf16.mxu0 0
          %1104 = vmatpush1.bf16.msra.mxu0 %v888
          %1105 = vmatprep.subr.bf16.mxu0 0
          %1106 = vmatpush1.bf16.msra.mxu0 %v889
          %1107 = vmatprep.subr.bf16.mxu0 0
          %1108 = vmatpush1.bf16.msra.mxu0 %v890
          %1109 = vmatprep.subr.bf16.mxu0 0
          %1110 = vmatpush1.bf16.msra.mxu0 %v891
          %1111 = vmatprep.mubr.bf16.mxu0 %v563
          %1112 = vmatmul.mubr.bf16.gmra.mrb[0].mxu0 %v562
          %v1113 = vpop.f32.mrb[0].mxu0
          %v1114 = vadd.f32 %v1073, %v1113
          %v1115 = vpop.f32.mrb[0].mxu0
          %v1116 = vpop.f32.mrb[0].mxu0
          %v1117 = vadd.f32 %v1076, %v1116
          %v1118 = vpop.f32.mrb[0].mxu0
          %1119 = vdwg.mxu0
          %v1120 = vlaneseq
          %v1121 = vshrl.u32 %v1120, 7
          %v1122 = vsub.s32 1, %v1121
          %v1123 = vrot.slane %v391, %v1122
          %v1124 = vadd.f32 %v1114, %v1123
          %v1125 = vadd.f32 %v1117, %v1123
          %1126 = vadd.xlane.f32.xlu0 %v1124
          %v1127 = vpop.xlane.xlu0 %1126
          %1128 = vadd.xlane.f32.xlu0 %v1125
          %v1129 = vpop.xlane.xlu0 %1128
          %v1130 = vrcp.pop 128.0
          %v1131 = vmul.f32 %v1127, %v1130
          %v1132 = vmul.f32 %v1129, %v1130
          %v1133 = vsub.f32 %v1124, %v1131
          %v1134 = vsub.f32 %v1125, %v1132
          %v1135 = vmul.f32 %v1133, %v1133
          %v1136 = vmul.f32 %v1134, %v1134
          %1137 = vadd.xlane.f32.xlu0 %v1135
          %v1138 = vpop.xlane.xlu0 %1137
          %1139 = vadd.xlane.f32.xlu0 %v1136
          %v1140 = vpop.xlane.xlu0 %1139
          %v1141 = vmul.f32 %v1138, %v1130
          %v1142 = vmul.f32 %v1140, %v1130
          %v1143 = vadd.f32 %v1141, 1e-05
          %v1144 = vadd.f32 %v1142, 1e-05
          %v1145 = vrsqrt.pop %v1143
          %v1146 = vrsqrt.pop %v1144
          %v1147 = vmul.f32 %v1133, %v1145
          %v1148 = vmul.f32 %v1134, %v1146
          %v1149 = vlaneseq
          %v1150 = vshrl.u32 %v1149, 7
          %v1151 = vsub.s32 2, %v1150
          %v1152 = vrot.slane %v391, %v1151
          %v1153 = vmul.f32 %v1147, %v1152
          %v1154 = vmul.f32 %v1148, %v1152
          %v1155 = vlaneseq
          %v1156 = vshrl.u32 %v1155, 7
          %v1157 = vsub.s32 3, %v1156
          %v1158 = vrot.slane %v391, %v1157
          %v1159 = vadd.f32 %v1153, %v1158
          %v1160 = vadd.f32 %v1154, %v1158
          %v1161 = vpack.c.bf16 %v1160, %v1159
          %1162 = vst [vmem:[#allocation2] sm:$0xff] %v1161
          %v1163 = vlaneseq
          %v1164 = vshrl.u32 %v1163, 7
          %v1165 = vsub.s32 4, %v1164
          %v1166 = vrot.slane %v391, %v1165
          %1167 = vst [vmem:[#allocation12] sm:$0xff] %v1166
          %1168 = vst [vmem:[#allocation12 + $0x8] sm:$0xff] %v1166
        $region68: #{tpu_custom_call.1} parent=43 // pred_fallthru
          _
        %v1169 = vld [vmem:[#allocation2] sm:$0xff]
        %v1170 = vld [vmem:[%s335] sm:$0xff]
        %v1171 = vld [vmem:[%s335 + $0x8] sm:$0xff]
        %v1172 = vld [vmem:[%s335 + $0x10] sm:$0xff]
        %v1173 = vld [vmem:[%s335 + $0x18] sm:$0xff]
        %v1174 = vld [vmem:[%s335 + $0x20] sm:$0xff]
        %v1175 = vld [vmem:[%s335 + $0x28] sm:$0xff]
        %v1176 = vld [vmem:[%s335 + $0x30] sm:$0xff]
        %v1177 = vld [vmem:[%s335 + $0x38] sm:$0xff]
        %v1178 = vld [vmem:[%s335 + $0x40] sm:$0xff]
        %v1179 = vld [vmem:[%s335 + $0x48] sm:$0xff]
        %v1180 = vld [vmem:[%s335 + $0x50] sm:$0xff]
        %v1181 = vld [vmem:[%s335 + $0x58] sm:$0xff]
        %v1182 = vld [vmem:[%s335 + $0x60] sm:$0xff]
        %v1183 = vld [vmem:[%s335 + $0x68] sm:$0xff]
        %v1184 = vld [vmem:[%s335 + $0x70] sm:$0xff]
        %v1185 = vld [vmem:[%s335 + $0x78] sm:$0xff]
        %v1186 = vld [vmem:[%s382] sm:$0x3]
        %v1188 = vlaneseq
        %v1189 = vshrl.u32 %v1188, 7
        %v1190 = vsub.s32 0, %v1189
        %v1191 = vrot.slane %v1186, %v1190
        %v1192 = vlaneseq
        %v1193 = vshrl.u32 %v1192, 7
        %v1194 = vsub.s32 1, %v1193
        %v1195 = vrot.slane %v1186, %v1194
        %v1214 = vunpack.c.l.b16 %v1170
        %v1215 = vunpack.c.h.b16 %v1170
        %v1216 = vunpack.c.l.b16 %v1171
        %v1217 = vunpack.c.h.b16 %v1171
        %v1218 = vunpack.c.l.b16 %v1172
        %v1219 = vunpack.c.h.b16 %v1172
        %v1220 = vunpack.c.l.b16 %v1173
        %v1221 = vunpack.c.h.b16 %v1173
        %v1222 = vunpack.c.l.b16 %v1174
        %v1223 = vunpack.c.h.b16 %v1174
        %v1224 = vunpack.c.l.b16 %v1175
        %v1225 = vunpack.c.h.b16 %v1175
        %v1226 = vunpack.c.l.b16 %v1176
        %v1227 = vunpack.c.h.b16 %v1176
        %v1228 = vunpack.c.l.b16 %v1177
        %v1229 = vunpack.c.h.b16 %v1177
        %v1230 = vunpack.c.l.b16 %v1178
        %v1231 = vunpack.c.h.b16 %v1178
        %v1232 = vunpack.c.l.b16 %v1179
        %v1233 = vunpack.c.h.b16 %v1179
        %v1234 = vunpack.c.l.b16 %v1180
        %v1235 = vunpack.c.h.b16 %v1180
        %v1236 = vunpack.c.l.b16 %v1181
        %v1237 = vunpack.c.h.b16 %v1181
        %v1238 = vunpack.c.l.b16 %v1182
        %v1239 = vunpack.c.h.b16 %v1182
        %v1240 = vunpack.c.l.b16 %v1183
        %v1241 = vunpack.c.h.b16 %v1183
        %v1242 = vunpack.c.l.b16 %v1184
        %v1243 = vunpack.c.h.b16 %v1184
        %v1244 = vunpack.c.l.b16 %v1185
        %v1245 = vunpack.c.h.b16 %v1185
        %v1246 = vpack.c.b16 %v1216, %v1214
        %v1247 = vpack.c.b16 %v1217, %v1215
        %v1248 = vpack.c.b16 %v1220, %v1218
        %v1249 = vpack.c.b16 %v1221, %v1219
        %v1250 = vpack.c.b16 %v1224, %v1222
        %v1251 = vpack.c.b16 %v1225, %v1223
        %v1252 = vpack.c.b16 %v1228, %v1226
        %v1253 = vpack.c.b16 %v1229, %v1227
        %v1254 = vpack.c.b16 %v1232, %v1230
        %v1255 = vpack.c.b16 %v1233, %v1231
        %v1256 = vpack.c.b16 %v1236, %v1234
        %v1257 = vpack.c.b16 %v1237, %v1235
        %v1258 = vpack.c.b16 %v1240, %v1238
        %v1259 = vpack.c.b16 %v1241, %v1239
        %v1260 = vpack.c.b16 %v1244, %v1242
        %v1261 = vpack.c.b16 %v1245, %v1243
        %1278 = vmatprep.subr.bf16.mxu0 %v1247
        %1279 = vmatpush1.bf16.msra.mxu0 %v1246
        %1280 = vmatprep.subr.bf16.mxu0 %v1249
        %1281 = vmatpush1.bf16.msra.mxu0 %v1248
        %1282 = vmatprep.subr.bf16.mxu0 %v1251
        %1283 = vmatpush1.bf16.msra.mxu0 %v1250
        %1284 = vmatprep.subr.bf16.mxu0 %v1253
        %1285 = vmatpush1.bf16.msra.mxu0 %v1252
        %1286 = vmatprep.subr.bf16.mxu0 %v1255
        %1287 = vmatpush1.bf16.msra.mxu0 %v1254
        %1288 = vmatprep.subr.bf16.mxu0 %v1257
        %1289 = vmatpush1.bf16.msra.mxu0 %v1256
        %1290 = vmatprep.subr.bf16.mxu0 %v1259
        %1291 = vmatpush1.bf16.msra.mxu0 %v1258
        %1292 = vmatprep.subr.bf16.mxu0 %v1261
        %1293 = vmatpush1.bf16.msra.mxu0 %v1260
        %1294 = vmatprep.subr.bf16.mxu0 0
        %1295 = vmatpush1.bf16.msra.mxu0 0
        %1296 = vmatprep.subr.bf16.mxu0 0
        %1297 = vmatpush1.bf16.msra.mxu0 0
        %1298 = vmatprep.subr.bf16.mxu0 0
        %1299 = vmatpush1.bf16.msra.mxu0 0
        %1300 = vmatprep.subr.bf16.mxu0 0
        %1301 = vmatpush1.bf16.msra.mxu0 0
        %1302 = vmatprep.subr.bf16.mxu0 0
        %1303 = vmatpush1.bf16.msra.mxu0 0
        %1304 = vmatprep.subr.bf16.mxu0 0
        %1305 = vmatpush1.bf16.msra.mxu0 0
        %1306 = vmatprep.subr.bf16.mxu0 0
        %1307 = vmatpush1.bf16.msra.mxu0 0
        %1308 = vmatprep.subr.bf16.mxu0 0
        %1309 = vmatpush1.bf16.msra.mxu0 0
        %1310 = vmatprep.mubr.bf16.mxu0 0
        %1311 = vmatmul.mubr.bf16.gmra.mrb[0].mxu0 %v1169
        %v1312 = vpop.f32.mrb[0].mxu0
        %v1313 = vadd.f32 %v1191, %v1312
        %v1314 = vpop.f32.mrb[0].mxu0
        %v1315 = vadd.f32 %v1195, %v1314
        %v1316 = vpop.f32.mrb[0].mxu0
        %v1317 = vadd.f32 %v1191, %v1316
        %v1318 = vpop.f32.mrb[0].mxu0
        %v1319 = vadd.f32 %v1195, %v1318
        %1320 = vdwg.mxu0
        %v1321 = vmul.f32 %v1313, 0.5
        %v1322 = vmul.f32 %v1315, 0.5
        %v1323 = vmul.f32 %v1317, 0.5
        %v1324 = vmul.f32 %v1319, 0.5
        %v1325 = vmul.f32 %v1313, 0.70710677
        %v1326 = vmul.f32 %v1315, 0.70710677
        %v1327 = vmul.f32 %v1317, 0.70710677
        %v1328 = vmul.f32 %v1319, 0.70710677
        %v1329 = verf.f32.pop %v1325
        %v1330 = verf.f32.pop %v1326
        %v1331 = verf.f32.pop %v1327
        %v1332 = verf.f32.pop %v1328
        %v1333 = vadd.f32 %v1329, 1.0
        %v1334 = vadd.f32 %v1330, 1.0
        %v1335 = vadd.f32 %v1331, 1.0
        %v1336 = vadd.f32 %v1332, 1.0
        %v1337 = vmul.f32 %v1321, %v1333
        %v1338 = vmul.f32 %v1322, %v1334
        %v1339 = vmul.f32 %v1323, %v1335
        %v1340 = vmul.f32 %v1324, %v1336
        %v1341 = vld [vmem:[#allocation12] sm:$0xff]
        %v1342 = vld [vmem:[#allocation12 + $0x8] sm:$0xff]
        %v1343 = vpack.c.bf16 %v1339, %v1337
        %v1344 = vpack.c.bf16 %v1340, %v1338
        %v1345 = vld [vmem:[%s344] sm:$0xf]
        %v1346 = vld [vmem:[%s344 + $0x4] sm:$0xf]
        %v1347 = vld [vmem:[%s344 + $0x8] sm:$0xf]
        %v1348 = vld [vmem:[%s344 + $0xc] sm:$0xf]
        %v1349 = vld [vmem:[%s344 + $0x10] sm:$0xf]
        %v1350 = vld [vmem:[%s344 + $0x14] sm:$0xf]
        %v1351 = vld [vmem:[%s344 + $0x18] sm:$0xf]
        %v1352 = vld [vmem:[%s344 + $0x1c] sm:$0xf]
        %v1353 = vld [vmem:[%s344 + $0x20] sm:$0xf]
        %v1354 = vld [vmem:[%s344 + $0x24] sm:$0xf]
        %v1355 = vld [vmem:[%s344 + $0x28] sm:$0xf]
        %v1356 = vld [vmem:[%s344 + $0x2c] sm:$0xf]
        %v1357 = vld [vmem:[%s344 + $0x30] sm:$0xf]
        %v1358 = vld [vmem:[%s344 + $0x34] sm:$0xf]
        %v1359 = vld [vmem:[%s344 + $0x38] sm:$0xf]
        %v1360 = vld [vmem:[%s344 + $0x3c] sm:$0xf]
        %v1361 = vld [vmem:[%s344 + $0x40] sm:$0xf]
        %v1362 = vld [vmem:[%s344 + $0x44] sm:$0xf]
        %v1363 = vld [vmem:[%s344 + $0x48] sm:$0xf]
        %v1364 = vld [vmem:[%s344 + $0x4c] sm:$0xf]
        %v1365 = vld [vmem:[%s344 + $0x50] sm:$0xf]
        %v1366 = vld [vmem:[%s344 + $0x54] sm:$0xf]
        %v1367 = vld [vmem:[%s344 + $0x58] sm:$0xf]
        %v1368 = vld [vmem:[%s344 + $0x5c] sm:$0xf]
        %v1369 = vld [vmem:[%s344 + $0x60] sm:$0xf]
        %v1370 = vld [vmem:[%s344 + $0x64] sm:$0xf]
        %v1371 = vld [vmem:[%s344 + $0x68] sm:$0xf]
        %v1372 = vld [vmem:[%s344 + $0x6c] sm:$0xf]
        %v1373 = vld [vmem:[%s344 + $0x70] sm:$0xf]
        %v1374 = vld [vmem:[%s344 + $0x74] sm:$0xf]
        %v1375 = vld [vmem:[%s344 + $0x78] sm:$0xf]
        %v1376 = vld [vmem:[%s344 + $0x7c] sm:$0xf]
        %v1409 = vunpack.c.l.b16 %v1345
        %v1410 = vunpack.c.l.b16 %v1346
        %v1411 = vunpack.c.l.b16 %v1347
        %v1412 = vunpack.c.l.b16 %v1348
        %v1413 = vunpack.c.l.b16 %v1349
        %v1414 = vunpack.c.l.b16 %v1350
        %v1415 = vunpack.c.l.b16 %v1351
        %v1416 = vunpack.c.l.b16 %v1352
        %v1417 = vunpack.c.l.b16 %v1353
        %v1418 = vunpack.c.l.b16 %v1354
        %v1419 = vunpack.c.l.b16 %v1355
        %v1420 = vunpack.c.l.b16 %v1356
        %v1421 = vunpack.c.l.b16 %v1357
        %v1422 = vunpack.c.l.b16 %v1358
        %v1423 = vunpack.c.l.b16 %v1359
        %v1424 = vunpack.c.l.b16 %v1360
        %v1425 = vunpack.c.l.b16 %v1361
        %v1426 = vunpack.c.l.b16 %v1362
        %v1427 = vunpack.c.l.b16 %v1363
        %v1428 = vunpack.c.l.b16 %v1364
        %v1429 = vunpack.c.l.b16 %v1365
        %v1430 = vunpack.c.l.b16 %v1366
        %v1431 = vunpack.c.l.b16 %v1367
        %v1432 = vunpack.c.l.b16 %v1368
        %v1433 = vunpack.c.l.b16 %v1369
        %v1434 = vunpack.c.l.b16 %v1370
        %v1435 = vunpack.c.l.b16 %v1371
        %v1436 = vunpack.c.l.b16 %v1372
        %v1437 = vunpack.c.l.b16 %v1373
        %v1438 = vunpack.c.l.b16 %v1374
        %v1439 = vunpack.c.l.b16 %v1375
        %v1440 = vunpack.c.l.b16 %v1376
        %v1441 = vpack.c.b16 %v1410, %v1409
        %v1442 = vpack.c.b16 %v1412, %v1411
        %v1443 = vpack.c.b16 %v1414, %v1413
        %v1444 = vpack.c.b16 %v1416, %v1415
        %v1445 = vpack.c.b16 %v1418, %v1417
        %v1446 = vpack.c.b16 %v1420, %v1419
        %v1447 = vpack.c.b16 %v1422, %v1421
        %v1448 = vpack.c.b16 %v1424, %v1423
        %v1449 = vpack.c.b16 %v1426, %v1425
        %v1450 = vpack.c.b16 %v1428, %v1427
        %v1451 = vpack.c.b16 %v1430, %v1429
        %v1452 = vpack.c.b16 %v1432, %v1431
        %v1453 = vpack.c.b16 %v1434, %v1433
        %v1454 = vpack.c.b16 %v1436, %v1435
        %v1455 = vpack.c.b16 %v1438, %v1437
        %v1456 = vpack.c.b16 %v1440, %v1439
        %1473 = vmatprep.subr.bf16.mxu0 0
        %1474 = vmatpush1.bf16.msra.mxu0 %v1441
        %1475 = vmatprep.subr.bf16.mxu0 0
        %1476 = vmatpush1.bf16.msra.mxu0 %v1442
        %1477 = vmatprep.subr.bf16.mxu0 0
        %1478 = vmatpush1.bf16.msra.mxu0 %v1443
        %1479 = vmatprep.subr.bf16.mxu0 0
        %1480 = vmatpush1.bf16.msra.mxu0 %v1444
        %1481 = vmatprep.subr.bf16.mxu0 0
        %1482 = vmatpush1.bf16.msra.mxu0 %v1445
        %1483 = vmatprep.subr.bf16.mxu0 0
        %1484 = vmatpush1.bf16.msra.mxu0 %v1446
        %1485 = vmatprep.subr.bf16.mxu0 0
        %1486 = vmatpush1.bf16.msra.mxu0 %v1447
        %1487 = vmatprep.subr.bf16.mxu0 0
        %1488 = vmatpush1.bf16.msra.mxu0 %v1448
        %1489 = vmatprep.subr.bf16.mxu0 0
        %1490 = vmatpush1.bf16.msra.mxu0 %v1449
        %1491 = vmatprep.subr.bf16.mxu0 0
        %1492 = vmatpush1.bf16.msra.mxu0 %v1450
        %1493 = vmatprep.subr.bf16.mxu0 0
        %1494 = vmatpush1.bf16.msra.mxu0 %v1451
        %1495 = vmatprep.subr.bf16.mxu0 0
        %1496 = vmatpush1.bf16.msra.mxu0 %v1452
        %1497 = vmatprep.subr.bf16.mxu0 0
        %1498 = vmatpush1.bf16.msra.mxu0 %v1453
        %1499 = vmatprep.subr.bf16.mxu0 0
        %1500 = vmatpush1.bf16.msra.mxu0 %v1454
        %1501 = vmatprep.subr.bf16.mxu0 0
        %1502 = vmatpush1.bf16.msra.mxu0 %v1455
        %1503 = vmatprep.subr.bf16.mxu0 0
        %1504 = vmatpush1.bf16.msra.mxu0 %v1456
        %1505 = vmatprep.mubr.bf16.mxu0 %v1344
        %1506 = vmatmul.mubr.bf16.gmra.mrb[0].mxu0 %v1343
        %v1507 = vpop.f32.mrb[0].mxu0
        %v1508 = vadd.f32 0.0, %v1507
        %v1509 = vpop.f32.mrb[0].mxu0
        %v1510 = vpop.f32.mrb[0].mxu0
        %v1511 = vadd.f32 0.0, %v1510
        %v1512 = vpop.f32.mrb[0].mxu0
        %1513 = vdwg.mxu0
        %v1514 = vadd.f32 %v1341, %v1508
        %v1515 = vadd.f32 %v1342, %v1511
        %1516 = vst [vmem:[#allocation12] sm:$0xff] %v1514
        %1517 = vst [vmem:[#allocation12 + $0x8] sm:$0xff] %v1515
        // Predicated region
        $region69: #{tpu_custom_call.1} parent=43 // pred_check
          %p1518 = pneg %p199
        $region70: #{tpu_custom_call.1} parent=43 // pred_check_branch
          %1520 = sbr.rel (%p1518) target = $region72
        $region71: #{tpu_custom_call.1} parent=43 // pred_region
          %s1521 = smul.u32 2, %s27
          %s1523 = ssub.s32 256, 256
          %1524 = vsyncadd [#allocation5], %s1523
          %s1525 = smul.addr %s1521, 128
          %s1526 = scalar_lea.hbm %s6, %s1525
          %s1527 = sshll.u32 [#allocation12], 4
          %s1528 = int_to_ptr.vmem [resolvable:$true] %s1527
          %1533 = dma.vmem_to_hbm [thread:$0]  %s1528, 256, %s1526, [#allocation5], 128, 128, 8
        $region72: #{tpu_custom_call.1} parent=43 // pred_fallthru
          _
        // Predicated region
        $region73: #{tpu_custom_call.1} parent=43 // pred_check
          %p1534 = pneg %p199
        $region74: #{tpu_custom_call.1} parent=43 // pred_check_branch
          %1536 = sbr.rel (%p1534) target = $region76
        $region75: #{tpu_custom_call.1} parent=43 // pred_region
          %1537 = dma.done [#allocation5], 256
        $region76: #{tpu_custom_call.1} parent=43 // pred_fallthru
          _
      $region44: #{tpu_custom_call.1} parent=5 // pred_fallthru
        _
      %p1538 = scmp.le.s32.totalorder 2, %s18
      // Predicated region
      $region77: #{tpu_custom_call.1} parent=5 // pred_check
        %p1539 = pneg %p1538
      $region78: #{tpu_custom_call.1} parent=5 // pred_check_branch
        %1541 = sbr.rel (%p1539) target = $region80
      $region79: #{tpu_custom_call.1} parent=5 // pred_region
        %s1542 = ssub.s32 %s18, 2
      $region80: #{tpu_custom_call.1} parent=5 // pred_fallthru
        _
    $region6: #{tpu_custom_call.1} parent=1 // loop_footer
      %s22 = sadd.s32 1, %s18
    $region7: #{tpu_custom_call.1} parent=1 // loop_footer_branch
      %17 = sbr.rel target = $region3
    $region8: #{tpu_custom_call.1} parent=1 // loop_exit
      _
    %1543 = vsyncpa [#allocation4], 1
    %s1544 = scalar_lea.sflag [#allocation4], 1
    %1545 = vsyncpa %s1544, 1
    %1546 = vsyncpa [#allocation7], 1
    %1547 = vsyncpa [#allocation10], 1
    %s1548 = scalar_lea.sflag [#allocation10], 1
    %1549 = vsyncpa %s1548, 1
    %1550 = vsyncpa [#allocation5], 1
    %s1551 = scalar_lea.sflag [#allocation5], 1
    %1552 = vsyncpa %s1551, 1

</llo_original>
